<compile_context>
chip_gen: v7x
topology: tpu7x:2x2x1
jax: 0.10.0
libtpu: 0.0.40
codegen_flags: <defaults>
</compile_context>

<pallas_src>
import math
import functools

import numpy as np
import jax
import jax.numpy as jnp
from jax import lax
from jax.experimental import pallas as pl
from jax.experimental.pallas import tpu as pltpu


def _round_up(x, m):
    return ((x + m - 1) // m) * m


def _hiersoftmax_kernel(x_ref, ind_ref, w_ref, a_ref, probs_ref, *, dim, L):
    """One grid step == `tb` batch rows; minor data flattened to L*dim lanes.

    x_ref    : VMEM (tb, dim)     f32        inputs tile
    ind_ref  : VMEM (tb, L)       f32        indicators[label[b]] (pre-gathered)
    w_ref    : VMEM (tb, L*dim)   f32/bf16   W[label[b]], (L, dim) row-major flat
    a_ref    : VMEM (tb, L*dim)   f32/bf16   _a tile, same flat layout
    probs_ref: VMEM (tb, 1)       f32        prod_l sigmoid(score_l)
    """
    f32 = jnp.float32
    tb = x_ref.shape[0]
    LD = L * dim

    x = x_ref[...].astype(f32)                     # (tb, dim)
    w = w_ref[...].astype(f32)                     # (tb, L*dim)

    # lane index along the flattened (L, dim) axis
    k_idx = lax.broadcasted_iota(jnp.int32, (1, LD), 1)      # (1, LD)
    inv_sqrt_dim = f32(1.0 / math.sqrt(dim))

    ind_exp = jnp.zeros((tb, LD), f32)             # ind_exp[b, l*dim+d] = ind[b, l]
    logp_sum = jnp.zeros((tb, 1), f32)

    # L is small and static -> unrolled trace-time loop.
    for l in range(L):
        ind_l = ind_ref[:, l:l + 1].astype(f32)                       # (tb, 1)
        in_level = (k_idx >= l * dim) & (k_idx < (l + 1) * dim)       # (1, LD) bool
        # expand indicators onto this level's lane segment (VPU select)
        ind_exp = jnp.where(in_level, ind_l, ind_exp)

        # scores[b, l] = <x[b], ind[b,l] * W[b, l, :]> / sqrt(dim)
        w_l = w_ref[:, l * dim:(l + 1) * dim].astype(f32)             # (tb, dim)
        s = jnp.sum(x * w_l, axis=-1, keepdims=True) * (ind_l * inv_sqrt_dim)
        # log_sigmoid(s) = min(s, 0) - log(1 + exp(-|s|))   (stable form)
        logp_sum = logp_sum + jnp.minimum(s, 0.0) - jnp.log(1.0 + jnp.exp(-jnp.abs(s)))

    # _a = indicators * W in the final flat layout — single lane-dense store.
    a_ref[...] = (w * ind_exp).astype(a_ref.dtype)
    # prod_l sigmoid(s_l) == exp(sum_l log_sigmoid(s_l))
    probs_ref[...] = jnp.exp(logp_sum)                                # (tb, 1)


def hier_softmax_forward(inputs, label_indices, W, indicators, *, tb=512,
                         io_dtype=jnp.float32):
    """Pallas equivalent of HierSoftmax.forward.

    inputs:        (B, dim)            float32
    label_indices: (B,)                int32
    W:             (n_nodes, dim, L)   float32
    indicators:    (n_nodes, L)        float32 (+1 / -1)
    tb:            batch rows per grid step (rounded to the sublane multiple,
                   clamped to the padded batch).
    io_dtype:      dtype of the two dominant HBM streams (gathered W in, _a
                   out).  Default f32 matches the torch module; jnp.bfloat16
                   halves the streaming bytes on v6e/v7x (and the v5e store
                   path) — scores/probs are still accumulated in f32.

    Returns (probs (B,), _a (B, L, dim) in io_dtype, _b (B, dim, 1)).
    """
    B, dim = inputs.shape
    n_nodes, _, L = W.shape
    labels = label_indices.astype(jnp.int32)

    # --- tile sizing (multiple of 8 for f32 tiles, 16 for bf16) -------------
    sub = 16 if jnp.dtype(io_dtype).itemsize < 4 else 8
    tb_eff = max(sub, _round_up(min(tb, _round_up(B, sub)), sub))
    n_tiles = pl.cdiv(B, tb_eff)
    b_pad = n_tiles * tb_eff
    pad = b_pad - B

    # --- wrapper-side gathers: gather FIRST (O(B)), then transpose/flatten ---
    # Padding is fused into the gather by padding the labels, so the big
    # gathered tensors are never jnp.pad-copied.
    labels_p = jnp.pad(labels, (0, pad)) if pad else labels
    w_g = W[labels_p]                                        # (b_pad, dim, L)
    w_g = jnp.transpose(w_g, (0, 2, 1)).reshape(b_pad, L * dim).astype(io_dtype)
    ind_g = indicators[labels_p].astype(jnp.float32)         # (b_pad, L)
    inputs_p = jnp.pad(inputs, ((0, pad), (0, 0))) if pad else inputs
    # TODO(synk): for production (n_nodes >> B, large L*dim) cache a
    # pre-flattened W once per parameter update, or gather W rows in-kernel via
    # scalar-prefetched labels + manual DMA so the W stream is touched once.

    kernel = functools.partial(_hiersoftmax_kernel, dim=dim, L=L)

    # Explicit VMEM limit so the chosen tb stays viable on v7x's 64 MiB as well
    # as v5e/v6e's 128 MiB (estimate is lane-padded, double-buffered, + slack).
    lane_pad = lambda n: _round_up(n, 128)
    io_b = jnp.dtype(io_dtype).itemsize
    per_buf = tb_eff * (lane_pad(L * dim) * io_b * 2         # w in + _a out
                        + lane_pad(dim) * 4                  # x
                        + lane_pad(L) * 4                    # ind
                        + 128 * 4)                           # probs
    vmem_limit = int(min(64 * 2**20, max(16 * 2**20, 4 * per_buf)))

    a_flat, probs_pad = pl.pallas_call(
        kernel,
        out_shape=(
            jax.ShapeDtypeStruct((b_pad, L * dim), io_dtype),
            jax.ShapeDtypeStruct((b_pad, 1), jnp.float32),
        ),
        grid_spec=pltpu.PrefetchScalarGridSpec(
            num_scalar_prefetch=0,
            grid=(n_tiles,),
            in_specs=[
                pl.BlockSpec((tb_eff, dim), lambda i: (i, 0)),        # inputs
                pl.BlockSpec((tb_eff, L), lambda i: (i, 0)),          # indicators
                pl.BlockSpec((tb_eff, L * dim), lambda i: (i, 0)),    # gathered W
            ],
            out_specs=(
                pl.BlockSpec((tb_eff, L * dim), lambda i: (i, 0)),    # _a (flat)
                pl.BlockSpec((tb_eff, 1), lambda i: (i, 0)),          # probs
            ),
        ),
        compiler_params=pltpu.CompilerParams(
            dimension_semantics=("parallel",),        # independent batch tiles
            vmem_limit_bytes=vmem_limit,
        ),
    )(inputs_p, ind_g, w_g)

    _a = a_flat.reshape(b_pad, L, dim)            # free reshape, already (L, dim) order
    probs = probs_pad[:, 0]
    if pad:
        # TODO(synk): return the padded outputs (or pick tb | B) if the caller
        # tolerates it — this slice is an extra HBM pass over _a.
        _a = _a[:B]
        probs = probs[:B]
    _b = inputs[:, :, None]                        # .unsqueeze(-1) -> (B, dim, 1)
    return probs, _a, _b


def build_indicators(n_nodes):
    """Deterministic stand-in for TreeTools + random_binary_full_tree(shuffle=False):
    a full binary tree over range(n_nodes); leaf i's root-to-leaf path is its L-bit
    binary expansion (0 = left -> +1, 1 = right -> -1), padded with +1."""
    L = math.ceil(math.log(n_nodes, 2))
    ind = np.ones((n_nodes, L), dtype=np.float32)
    for i in range(n_nodes):
        for l in range(L):
            bit = (i >> (L - 1 - l)) & 1
            ind[i, l] = 1.0 if bit == 0 else -1.0
    return jnp.asarray(ind)


if __name__ == "__main__":
    # Small but multi-tile shapes: 3 grid steps of tb=128 with a ragged tail,
    # and L*dim = 128 == one full lane width.
    n_nodes, dim, B, tb = 16, 32, 300, 128
    L = math.ceil(math.log(n_nodes, 2))           # 4

    key = jax.random.PRNGKey(0)
    kx, kw, kl = jax.random.split(key, 3)

    inputs = jax.random.normal(kx, (B, dim), dtype=jnp.float32)
    W = jax.random.uniform(kw, (n_nodes, dim, L), dtype=jnp.float32)  # torch.rand
    label_indices = jax.random.randint(kl, (B,), 0, n_nodes, dtype=jnp.int32)
    indicators = build_indicators(n_nodes)

    fwd = jax.jit(hier_softmax_forward, static_argnames=("tb", "io_dtype"))
    probs, _a, _b = jax.block_until_ready(
        fwd(inputs, label_indices, W, indicators, tb=tb))

    # Pure-JAX reference (mirrors the torch forward).
    a_ref = indicators[label_indices][:, None, :] * W[label_indices]   # (B, dim, L)
    a_ref_t = jnp.transpose(a_ref, (0, 2, 1))                          # (B, L, dim)
    scores = jnp.einsum("bld,bd->bl", a_ref_t, inputs) / math.sqrt(dim)
    probs_ref = jnp.prod(jax.nn.sigmoid(scores), axis=1)

    assert probs.shape == (B,)
    assert _a.shape == (B, L, dim)
    assert _b.shape == (B, dim, 1)
    np.testing.assert_allclose(np.asarray(probs), np.asarray(probs_ref),
                               rtol=1e-5, atol=1e-6)
    np.testing.assert_allclose(np.asarray(_a), np.asarray(a_ref_t),
                               rtol=1e-5, atol=1e-6)
    np.testing.assert_allclose(np.asarray(_b), np.asarray(inputs[:, :, None]),
                               rtol=0, atol=0)
    print("KERNEL_OK")
</pallas_src>

<mosaic_0001>
module attributes {stable_mosaic.version = 11 : i64} {
  func.func @_hiersoftmax_kernel(%arg0: i32, %arg1: memref<128x32xf32, #tpu.memory_space<vmem>>, %arg2: memref<128x4xf32, #tpu.memory_space<vmem>>, %arg3: memref<128x128xf32, #tpu.memory_space<vmem>>, %arg4: memref<128x128xf32, #tpu.memory_space<vmem>>, %arg5: memref<128x1xf32, #tpu.memory_space<vmem>>) attributes {dimension_semantics = [#tpu.dimension_semantics<parallel>], iteration_bounds = array<i64: 3>, scalar_prefetch = 0 : i64, scratch_operands = 0 : i64, tpu.core_type = #tpu.core_type<tc>, window_params = [{transform_indices = @transform_0, window_bounds = array<i64: 128, 32>}, {transform_indices = @transform_1, window_bounds = array<i64: 128, 4>}, {transform_indices = @transform_2, window_bounds = array<i64: 128, 128>}, {transform_indices = @transform_3, window_bounds = array<i64: 128, 128>}, {transform_indices = @transform_4, window_bounds = array<i64: 128, 1>}]} {
    %c0 = arith.constant 0 : index
    %c0_0 = arith.constant 0 : index
    %0 = vector.load %arg1[%c0, %c0_0] : memref<128x32xf32, #tpu.memory_space<vmem>>, vector<128x32xf32>
    %c0_1 = arith.constant 0 : index
    %c0_2 = arith.constant 0 : index
    %1 = vector.load %arg3[%c0_1, %c0_2] : memref<128x128xf32, #tpu.memory_space<vmem>>, vector<128x128xf32>
    %2 = tpu.iota {dimensions = array<i32: 1>} : vector<1x128xi32>
    %cst = arith.constant 0.000000e+00 : f32
    %3 = vector.broadcast %cst : f32 to vector<128x128xf32>
    %cst_3 = arith.constant 0.000000e+00 : f32
    %4 = vector.broadcast %cst_3 : f32 to vector<128x1xf32>
    %c0_4 = arith.constant 0 : index
    %c0_5 = arith.constant 0 : index
    %5 = vector.load %arg2[%c0_4, %c0_5] : memref<128x4xf32, #tpu.memory_space<vmem>>, vector<128x1xf32>
    %c0_i32 = arith.constant 0 : i32
    %6 = vector.broadcast %c0_i32 : i32 to vector<1x128xi32>
    %7 = arith.cmpi sge, %2, %6 : vector<1x128xi32>
    %c32_i32 = arith.constant 32 : i32
    %8 = vector.broadcast %c32_i32 : i32 to vector<1x128xi32>
    %9 = arith.cmpi slt, %2, %8 : vector<1x128xi32>
    %10 = arith.andi %7, %9 : vector<1x128xi1>
    %11 = vector.shape_cast %10 : vector<1x128xi1> to vector<1x128xi1>
    %12 = vector.broadcast %11 : vector<1x128xi1> to vector<128x128xi1>
    %13 = vector.shape_cast %5 : vector<128x1xf32> to vector<128x1xf32>
    %14 = vector.broadcast %13 : vector<128x1xf32> to vector<128x128xf32>
    %15 = arith.select %12, %14, %3 : vector<128x128xi1>, vector<128x128xf32>
    %c0_6 = arith.constant 0 : index
    %c0_7 = arith.constant 0 : index
    %16 = vector.load %arg3[%c0_6, %c0_7] : memref<128x128xf32, #tpu.memory_space<vmem>>, vector<128x32xf32>
    %17 = arith.mulf %0, %16 : vector<128x32xf32>
    %cst_8 = arith.constant dense<0.000000e+00> : vector<128xf32>
    %18 = vector.multi_reduction <add>, %17, %cst_8 [1] : vector<128x32xf32> to vector<128xf32>
    %19 = vector.shape_cast %18 : vector<128xf32> to vector<128x1xf32>
    %cst_9 = arith.constant 0.176776692 : f32
    %20 = vector.broadcast %cst_9 : f32 to vector<128x1xf32>
    %21 = arith.mulf %5, %20 : vector<128x1xf32>
    %22 = arith.mulf %19, %21 : vector<128x1xf32>
    %cst_10 = arith.constant 0.000000e+00 : f32
    %23 = vector.broadcast %cst_10 : f32 to vector<128x1xf32>
    %24 = arith.minimumf %22, %23 : vector<128x1xf32>
    %25 = arith.addf %4, %24 : vector<128x1xf32>
    %26 = math.absf %22 : vector<128x1xf32>
    %cst_11 = arith.constant 0.000000e+00 : f32
    %27 = vector.broadcast %cst_11 : f32 to vector<128x1xf32>
    %28 = arith.subf %27, %26 : vector<128x1xf32>
    %29 = math.exp %28 : vector<128x1xf32>
    %cst_12 = arith.constant 1.000000e+00 : f32
    %30 = vector.broadcast %cst_12 : f32 to vector<128x1xf32>
    %31 = arith.addf %30, %29 : vector<128x1xf32>
    %32 = math.log %31 : vector<128x1xf32>
    %33 = arith.subf %25, %32 : vector<128x1xf32>
    %c0_13 = arith.constant 0 : index
    %c1 = arith.constant 1 : index
    %34 = vector.load %arg2[%c0_13, %c1] : memref<128x4xf32, #tpu.memory_space<vmem>>, vector<128x1xf32>
    %c32_i32_14 = arith.constant 32 : i32
    %35 = vector.broadcast %c32_i32_14 : i32 to vector<1x128xi32>
    %36 = arith.cmpi sge, %2, %35 : vector<1x128xi32>
    %c64_i32 = arith.constant 64 : i32
    %37 = vector.broadcast %c64_i32 : i32 to vector<1x128xi32>
    %38 = arith.cmpi slt, %2, %37 : vector<1x128xi32>
    %39 = arith.andi %36, %38 : vector<1x128xi1>
    %40 = vector.shape_cast %39 : vector<1x128xi1> to vector<1x128xi1>
    %41 = vector.broadcast %40 : vector<1x128xi1> to vector<128x128xi1>
    %42 = vector.shape_cast %34 : vector<128x1xf32> to vector<128x1xf32>
    %43 = vector.broadcast %42 : vector<128x1xf32> to vector<128x128xf32>
    %44 = arith.select %41, %43, %15 : vector<128x128xi1>, vector<128x128xf32>
    %c0_15 = arith.constant 0 : index
    %c32 = arith.constant 32 : index
    %45 = vector.load %arg3[%c0_15, %c32] : memref<128x128xf32, #tpu.memory_space<vmem>>, vector<128x32xf32>
    %46 = arith.mulf %0, %45 : vector<128x32xf32>
    %cst_16 = arith.constant dense<0.000000e+00> : vector<128xf32>
    %47 = vector.multi_reduction <add>, %46, %cst_16 [1] : vector<128x32xf32> to vector<128xf32>
    %48 = vector.shape_cast %47 : vector<128xf32> to vector<128x1xf32>
    %cst_17 = arith.constant 0.176776692 : f32
    %49 = vector.broadcast %cst_17 : f32 to vector<128x1xf32>
    %50 = arith.mulf %34, %49 : vector<128x1xf32>
    %51 = arith.mulf %48, %50 : vector<128x1xf32>
    %cst_18 = arith.constant 0.000000e+00 : f32
    %52 = vector.broadcast %cst_18 : f32 to vector<128x1xf32>
    %53 = arith.minimumf %51, %52 : vector<128x1xf32>
    %54 = arith.addf %33, %53 : vector<128x1xf32>
    %55 = math.absf %51 : vector<128x1xf32>
    %cst_19 = arith.constant 0.000000e+00 : f32
    %56 = vector.broadcast %cst_19 : f32 to vector<128x1xf32>
    %57 = arith.subf %56, %55 : vector<128x1xf32>
    %58 = math.exp %57 : vector<128x1xf32>
    %cst_20 = arith.constant 1.000000e+00 : f32
    %59 = vector.broadcast %cst_20 : f32 to vector<128x1xf32>
    %60 = arith.addf %59, %58 : vector<128x1xf32>
    %61 = math.log %60 : vector<128x1xf32>
    %62 = arith.subf %54, %61 : vector<128x1xf32>
    %c0_21 = arith.constant 0 : index
    %c2 = arith.constant 2 : index
    %63 = vector.load %arg2[%c0_21, %c2] : memref<128x4xf32, #tpu.memory_space<vmem>>, vector<128x1xf32>
    %c64_i32_22 = arith.constant 64 : i32
    %64 = vector.broadcast %c64_i32_22 : i32 to vector<1x128xi32>
    %65 = arith.cmpi sge, %2, %64 : vector<1x128xi32>
    %c96_i32 = arith.constant 96 : i32
    %66 = vector.broadcast %c96_i32 : i32 to vector<1x128xi32>
    %67 = arith.cmpi slt, %2, %66 : vector<1x128xi32>
    %68 = arith.andi %65, %67 : vector<1x128xi1>
    %69 = vector.shape_cast %68 : vector<1x128xi1> to vector<1x128xi1>
    %70 = vector.broadcast %69 : vector<1x128xi1> to vector<128x128xi1>
    %71 = vector.shape_cast %63 : vector<128x1xf32> to vector<128x1xf32>
    %72 = vector.broadcast %71 : vector<128x1xf32> to vector<128x128xf32>
    %73 = arith.select %70, %72, %44 : vector<128x128xi1>, vector<128x128xf32>
    %c0_23 = arith.constant 0 : index
    %c64 = arith.constant 64 : index
    %74 = vector.load %arg3[%c0_23, %c64] : memref<128x128xf32, #tpu.memory_space<vmem>>, vector<128x32xf32>
    %75 = arith.mulf %0, %74 : vector<128x32xf32>
    %cst_24 = arith.constant dense<0.000000e+00> : vector<128xf32>
    %76 = vector.multi_reduction <add>, %75, %cst_24 [1] : vector<128x32xf32> to vector<128xf32>
    %77 = vector.shape_cast %76 : vector<128xf32> to vector<128x1xf32>
    %cst_25 = arith.constant 0.176776692 : f32
    %78 = vector.broadcast %cst_25 : f32 to vector<128x1xf32>
    %79 = arith.mulf %63, %78 : vector<128x1xf32>
    %80 = arith.mulf %77, %79 : vector<128x1xf32>
    %cst_26 = arith.constant 0.000000e+00 : f32
    %81 = vector.broadcast %cst_26 : f32 to vector<128x1xf32>
    %82 = arith.minimumf %80, %81 : vector<128x1xf32>
    %83 = arith.addf %62, %82 : vector<128x1xf32>
    %84 = math.absf %80 : vector<128x1xf32>
    %cst_27 = arith.constant 0.000000e+00 : f32
    %85 = vector.broadcast %cst_27 : f32 to vector<128x1xf32>
    %86 = arith.subf %85, %84 : vector<128x1xf32>
    %87 = math.exp %86 : vector<128x1xf32>
    %cst_28 = arith.constant 1.000000e+00 : f32
    %88 = vector.broadcast %cst_28 : f32 to vector<128x1xf32>
    %89 = arith.addf %88, %87 : vector<128x1xf32>
    %90 = math.log %89 : vector<128x1xf32>
    %91 = arith.subf %83, %90 : vector<128x1xf32>
    %c0_29 = arith.constant 0 : index
    %c3 = arith.constant 3 : index
    %92 = vector.load %arg2[%c0_29, %c3] : memref<128x4xf32, #tpu.memory_space<vmem>>, vector<128x1xf32>
    %c96_i32_30 = arith.constant 96 : i32
    %93 = vector.broadcast %c96_i32_30 : i32 to vector<1x128xi32>
    %94 = arith.cmpi sge, %2, %93 : vector<1x128xi32>
    %c128_i32 = arith.constant 128 : i32
    %95 = vector.broadcast %c128_i32 : i32 to vector<1x128xi32>
    %96 = arith.cmpi slt, %2, %95 : vector<1x128xi32>
    %97 = arith.andi %94, %96 : vector<1x128xi1>
    %98 = vector.shape_cast %97 : vector<1x128xi1> to vector<1x128xi1>
    %99 = vector.broadcast %98 : vector<1x128xi1> to vector<128x128xi1>
    %100 = vector.shape_cast %92 : vector<128x1xf32> to vector<128x1xf32>
    %101 = vector.broadcast %100 : vector<128x1xf32> to vector<128x128xf32>
    %102 = arith.select %99, %101, %73 : vector<128x128xi1>, vector<128x128xf32>
    %c0_31 = arith.constant 0 : index
    %c96 = arith.constant 96 : index
    %103 = vector.load %arg3[%c0_31, %c96] : memref<128x128xf32, #tpu.memory_space<vmem>>, vector<128x32xf32>
    %104 = arith.mulf %0, %103 : vector<128x32xf32>
    %cst_32 = arith.constant dense<0.000000e+00> : vector<128xf32>
    %105 = vector.multi_reduction <add>, %104, %cst_32 [1] : vector<128x32xf32> to vector<128xf32>
    %106 = vector.shape_cast %105 : vector<128xf32> to vector<128x1xf32>
    %cst_33 = arith.constant 0.176776692 : f32
    %107 = vector.broadcast %cst_33 : f32 to vector<128x1xf32>
    %108 = arith.mulf %92, %107 : vector<128x1xf32>
    %109 = arith.mulf %106, %108 : vector<128x1xf32>
    %cst_34 = arith.constant 0.000000e+00 : f32
    %110 = vector.broadcast %cst_34 : f32 to vector<128x1xf32>
    %111 = arith.minimumf %109, %110 : vector<128x1xf32>
    %112 = arith.addf %91, %111 : vector<128x1xf32>
    %113 = math.absf %109 : vector<128x1xf32>
    %cst_35 = arith.constant 0.000000e+00 : f32
    %114 = vector.broadcast %cst_35 : f32 to vector<128x1xf32>
    %115 = arith.subf %114, %113 : vector<128x1xf32>
    %116 = math.exp %115 : vector<128x1xf32>
    %cst_36 = arith.constant 1.000000e+00 : f32
    %117 = vector.broadcast %cst_36 : f32 to vector<128x1xf32>
    %118 = arith.addf %117, %116 : vector<128x1xf32>
    %119 = math.log %118 : vector<128x1xf32>
    %120 = arith.subf %112, %119 : vector<128x1xf32>
    %121 = arith.mulf %1, %102 : vector<128x128xf32>
    %c0_37 = arith.constant 0 : index
    %c0_38 = arith.constant 0 : index
    %122 = vector.load %arg4[%c0_37, %c0_38] : memref<128x128xf32, #tpu.memory_space<vmem>>, vector<128x128xf32>
    tpu.vector_store %arg4[%c0_37, %c0_38], %121 {strides = array<i32>} : memref<128x128xf32, #tpu.memory_space<vmem>>, vector<128x128xf32>,
    %123 = math.exp %120 : vector<128x1xf32>
    %c0_39 = arith.constant 0 : index
    %c0_40 = arith.constant 0 : index
    %124 = vector.load %arg5[%c0_39, %c0_40] : memref<128x1xf32, #tpu.memory_space<vmem>>, vector<128x1xf32>
    tpu.vector_store %arg5[%c0_39, %c0_40], %123 {strides = array<i32>} : memref<128x1xf32, #tpu.memory_space<vmem>>, vector<128x1xf32>,
    return
  }
  func.func @transform_0(%arg0: i32) -> (i32, i32) {
    %c0_i32 = arith.constant 0 : i32
    %c0_i32_0 = arith.constant 0 : i32
    return %arg0, %c0_i32 : i32, i32
  }
  func.func @transform_1(%arg0: i32) -> (i32, i32) {
    %c0_i32 = arith.constant 0 : i32
    %c0_i32_0 = arith.constant 0 : i32
    return %arg0, %c0_i32 : i32, i32
  }
  func.func @transform_2(%arg0: i32) -> (i32, i32) {
    %c0_i32 = arith.constant 0 : i32
    %c0_i32_0 = arith.constant 0 : i32
    return %arg0, %c0_i32 : i32, i32
  }
  func.func @transform_3(%arg0: i32) -> (i32, i32) {
    %c0_i32 = arith.constant 0 : i32
    %c0_i32_0 = arith.constant 0 : i32
    return %arg0, %c0_i32 : i32, i32
  }
  func.func @transform_4(%arg0: i32) -> (i32, i32) {
    %c0_i32 = arith.constant 0 : i32
    %c0_i32_0 = arith.constant 0 : i32
    return %arg0, %c0_i32 : i32, i32
  }
}

</mosaic_0001>

<llo_original>
// kernel: hier_softmax_forward.1
$region0: #{hier_softmax_forward.1}
  #allocation0 [shape = 'u32[]', space=smem, size = 0x4, offset = 0x4, fixed_abs, tag = 'smem constant byte address 0x4 - core index']
  #allocation1 [shape = 'u32[144,128]{1,0:T(1,128)}', space=vmem, size = 0x12000, scoped, tag = 'internal scratch']
  %s0 = inlined_call_operand.vmem [shape: f32[384,32], index: 0, kind: input, shape index: {}]
  %s1 = inlined_call_operand.vmem [shape: f32[384,4], index: 1, kind: input, shape index: {}]
  %s2 = inlined_call_operand.vmem [shape: f32[384,128], index: 2, kind: input, shape index: {}]
  %s3 = inlined_call_operand.vmem [shape: f32[384,128], index: 3, kind: output, shape index: {0}]
  %s4 = inlined_call_operand.vmem [shape: f32[384,1], index: 4, kind: output, shape index: {1}]
  %5 = xla_tuple %s3, %s4
  %s6 = sld [smem:[#allocation0]]
  $region53: #{hier_softmax_forward.1} parent=0
    _
  %s8 = ssub.s32 1, %s6
  %s9 = scalar_select 0, %s8, %s6
  loop: start=0, step=1, limit=5
  $region2: #{hier_softmax_forward.1} parent=0 // loop_pre_header
    _
  $region3: #{hier_softmax_forward.1} parent=0 // loop_header
    %s11 = sphi 0, %s15
    %p12 = scmp.ge.s32.totalorder %s11, 5
    %s21 = sphi 0, %s23
    %s24 = sphi 0, %s21
    %s25 = sphi 0, %s24
    %s41 = sphi 0, %s25
    %s47 = sphi 0, %s49
    %s50 = sphi 0, %s47
    %s51 = sphi 0, %s50
    %s67 = sphi 0, %s51
    %s73 = sphi 0, %s75
    %s76 = sphi 0, %s73
    %s77 = sphi 0, %s76
    %s93 = sphi 0, %s77
    %s99 = sphi 0, %s101
    %s102 = sphi 0, %s99
    %s103 = sphi 0, %s102
    %s119 = sphi 0, %s103
    %s125 = sphi 0, %s127
    %s128 = sphi 0, %s125
    %s129 = sphi 0, %s128
    %s145 = sphi 0, %s129
  $region4: #{hier_softmax_forward.1} parent=0 // loop_header_branch
    %14 = sbr.rel (%p12) target = $region8
  $region5: #{hier_softmax_forward.1} parent=0 // loop_body
    %s16 = ssub.s32 %s11, 1
    %s17 = ssub.s32 %s11, 2
    %s18 = sadd.s32 %s11, 1
    %s19 = ssub.s32 %s11, %s18
    %p20 = scmp.eq.s32.totalorder %s19, 0
    %s22 = sadd.s32 %s21, 1
    %s23 = scalar_select %p20, %s21, %s22
    %p26 = pneg %p20
    %p27 = scmp.eq.s32.totalorder %s11, 2
    %p28 = por %p26, %p27
    %p29 = scmp.ne.s32.totalorder %s21, %s24
    %p30 = scmp.eq.s32.totalorder %s11, 0
    %p31 = por %p29, %p30
    %p32 = scmp.ne.s32.totalorder %s21, %s24
    %p33 = scmp.eq.s32.totalorder %s16, 2
    %p34 = por %p32, %p33
    %p35 = scmp.ne.s32.totalorder %s24, %s25
    %p36 = scmp.eq.s32.totalorder %s16, 0
    %p37 = por %p35, %p36
    %p38 = scmp.ne.s32.totalorder %s24, %s25
    %p39 = scmp.eq.s32.totalorder %s17, 2
    %p40 = por %p38, %p39
    %p42 = scmp.ne.s32.totalorder %s25, %s41
    %p43 = scmp.eq.s32.totalorder %s17, 0
    %p44 = por %p42, %p43
    %s45 = ssub.s32 %s11, %s18
    %p46 = scmp.eq.s32.totalorder %s45, 0
    %s48 = sadd.s32 %s47, 1
    %s49 = scalar_select %p46, %s47, %s48
    %p52 = pneg %p46
    %p53 = scmp.eq.s32.totalorder %s11, 2
    %p54 = por %p52, %p53
    %p55 = scmp.ne.s32.totalorder %s47, %s50
    %p56 = scmp.eq.s32.totalorder %s11, 0
    %p57 = por %p55, %p56
    %p58 = scmp.ne.s32.totalorder %s47, %s50
    %p59 = scmp.eq.s32.totalorder %s16, 2
    %p60 = por %p58, %p59
    %p61 = scmp.ne.s32.totalorder %s50, %s51
    %p62 = scmp.eq.s32.totalorder %s16, 0
    %p63 = por %p61, %p62
    %p64 = scmp.ne.s32.totalorder %s50, %s51
    %p65 = scmp.eq.s32.totalorder %s17, 2
    %p66 = por %p64, %p65
    %p68 = scmp.ne.s32.totalorder %s51, %s67
    %p69 = scmp.eq.s32.totalorder %s17, 0
    %p70 = por %p68, %p69
    %s71 = ssub.s32 %s11, %s18
    %p72 = scmp.eq.s32.totalorder %s71, 0
    %s74 = sadd.s32 %s73, 1
    %s75 = scalar_select %p72, %s73, %s74
    %p78 = pneg %p72
    %p79 = scmp.eq.s32.totalorder %s11, 2
    %p80 = por %p78, %p79
    %p81 = scmp.ne.s32.totalorder %s73, %s76
    %p82 = scmp.eq.s32.totalorder %s11, 0
    %p83 = por %p81, %p82
    %p84 = scmp.ne.s32.totalorder %s73, %s76
    %p85 = scmp.eq.s32.totalorder %s16, 2
    %p86 = por %p84, %p85
    %p87 = scmp.ne.s32.totalorder %s76, %s77
    %p88 = scmp.eq.s32.totalorder %s16, 0
    %p89 = por %p87, %p88
    %p90 = scmp.ne.s32.totalorder %s76, %s77
    %p91 = scmp.eq.s32.totalorder %s17, 2
    %p92 = por %p90, %p91
    %p94 = scmp.ne.s32.totalorder %s77, %s93
    %p95 = scmp.eq.s32.totalorder %s17, 0
    %p96 = por %p94, %p95
    %s97 = ssub.s32 %s11, %s18
    %p98 = scmp.eq.s32.totalorder %s97, 0
    %s100 = sadd.s32 %s99, 1
    %s101 = scalar_select %p98, %s99, %s100
    %p104 = pneg %p98
    %p105 = scmp.eq.s32.totalorder %s11, 2
    %p106 = por %p104, %p105
    %p107 = scmp.ne.s32.totalorder %s99, %s102
    %p108 = scmp.eq.s32.totalorder %s11, 0
    %p109 = por %p107, %p108
    %p110 = scmp.ne.s32.totalorder %s99, %s102
    %p111 = scmp.eq.s32.totalorder %s16, 2
    %p112 = por %p110, %p111
    %p113 = scmp.ne.s32.totalorder %s102, %s103
    %p114 = scmp.eq.s32.totalorder %s16, 0
    %p115 = por %p113, %p114
    %p116 = scmp.ne.s32.totalorder %s102, %s103
    %p117 = scmp.eq.s32.totalorder %s17, 2
    %p118 = por %p116, %p117
    %p120 = scmp.ne.s32.totalorder %s103, %s119
    %p121 = scmp.eq.s32.totalorder %s17, 0
    %p122 = por %p120, %p121
    %s123 = ssub.s32 %s11, %s18
    %p124 = scmp.eq.s32.totalorder %s123, 0
    %s126 = sadd.s32 %s125, 1
    %s127 = scalar_select %p124, %s125, %s126
    %p130 = pneg %p124
    %p131 = scmp.eq.s32.totalorder %s11, 2
    %p132 = por %p130, %p131
    %p133 = scmp.ne.s32.totalorder %s125, %s128
    %p134 = scmp.eq.s32.totalorder %s11, 0
    %p135 = por %p133, %p134
    %p136 = scmp.ne.s32.totalorder %s125, %s128
    %p137 = scmp.eq.s32.totalorder %s16, 2
    %p138 = por %p136, %p137
    %p139 = scmp.ne.s32.totalorder %s128, %s129
    %p140 = scmp.eq.s32.totalorder %s16, 0
    %p141 = por %p139, %p140
    %p142 = scmp.ne.s32.totalorder %s128, %s129
    %p143 = scmp.eq.s32.totalorder %s17, 2
    %p144 = por %p142, %p143
    %p146 = scmp.ne.s32.totalorder %s129, %s145
    %p147 = scmp.eq.s32.totalorder %s17, 0
    %p148 = por %p146, %p147
    %p149 = scmp.le.s32.totalorder 1, %s11
    %p150 = scmp.lt.s32.totalorder %s11, 4
    %p151 = pnand %p149, %p150
    %p152 = pneg %p151
    // Predicated region
    $region9: #{hier_softmax_forward.1} parent=5 // pred_check
      _
    $region10: #{hier_softmax_forward.1} parent=5 // pred_check_branch
      %154 = sbr.rel (%p151) target = $region12
    $region11: #{hier_softmax_forward.1} parent=5 // pred_region
      %s155 = ssub.s32 %s11, 1
    $region12: #{hier_softmax_forward.1} parent=5 // pred_fallthru
      _
    %p156 = scmp.lt.s32.totalorder %s11, 3
    // Predicated region
    $region13: #{hier_softmax_forward.1} parent=5 // pred_check
      %p157 = pneg %p156
    $region14: #{hier_softmax_forward.1} parent=5 // pred_check_branch
      %159 = sbr.rel (%p157) target = $region16
    $region15: #{hier_softmax_forward.1} parent=5 // pred_region
      // Predicated region
      $region17: #{hier_softmax_forward.1} parent=15 // pred_check
        %p160 = pneg %p31
      $region18: #{hier_softmax_forward.1} parent=15 // pred_check_branch
        %162 = sbr.rel (%p160) target = $region20
      $region19: #{hier_softmax_forward.1} parent=15 // pred_region
        %s163 = smul.u32 16, %s11
        %p164 = scmp.lt.s32.totalorder %s163, 47
        %s165 = scalar_select %p164, %s163, 47
        %s166 = smul.addr %s165, 8
        %s167 = scalar_lea.vmem %s0, %s166
        %s168 = smul.u32 16, %s11
      $region20: #{hier_softmax_forward.1} parent=15 // pred_fallthru
        _
      // Predicated region
      $region21: #{hier_softmax_forward.1} parent=15 // pred_check
        %p169 = pneg %p57
      $region22: #{hier_softmax_forward.1} parent=15 // pred_check_branch
        %171 = sbr.rel (%p169) target = $region24
      $region23: #{hier_softmax_forward.1} parent=15 // pred_region
        %s172 = smul.u32 16, %s11
        %p173 = scmp.lt.s32.totalorder %s172, 47
        %s174 = scalar_select %p173, %s172, 47
        %s175 = smul.addr %s174, 8
        %s176 = scalar_lea.vmem %s1, %s175
        %s177 = smul.u32 16, %s11
      $region24: #{hier_softmax_forward.1} parent=15 // pred_fallthru
        _
      // Predicated region
      $region25: #{hier_softmax_forward.1} parent=15 // pred_check
        %p178 = pneg %p83
      $region26: #{hier_softmax_forward.1} parent=15 // pred_check_branch
        %180 = sbr.rel (%p178) target = $region28
      $region27: #{hier_softmax_forward.1} parent=15 // pred_region
        %s181 = smul.u32 16, %s11
        %p182 = scmp.lt.s32.totalorder %s181, 47
        %s183 = scalar_select %p182, %s181, 47
        %s184 = smul.addr %s183, 8
        %s185 = scalar_lea.vmem %s2, %s184
        %s186 = smul.u32 16, %s11
      $region28: #{hier_softmax_forward.1} parent=15 // pred_fallthru
        _
    $region16: #{hier_softmax_forward.1} parent=5 // pred_fallthru
      _
    %p187 = scmp.le.s32.totalorder 1, %s11
    %p188 = scmp.lt.s32.totalorder %s11, 4
    %p189 = pnand %p187, %p188
    %p190 = pneg %p189
    // Predicated region
    $region29: #{hier_softmax_forward.1} parent=5 // pred_check
      _
    $region30: #{hier_softmax_forward.1} parent=5 // pred_check_branch
      %192 = sbr.rel (%p189) target = $region32
    $region31: #{hier_softmax_forward.1} parent=5 // pred_region
      %s193 = ssub.s32 %s11, 1
      %s194 = smul.u32 16, %s16
      %p195 = scmp.lt.s32.totalorder %s194, 47
      %s196 = scalar_select %p195, %s194, 47
      %s197 = smul.addr %s196, 8
      %s198 = scalar_lea.vmem %s0, %s197
      %p199 = pneg %p37
      %p200 = pneg %p34
      %s201 = smul.u32 16, %s16
      %p202 = scmp.lt.s32.totalorder %s201, 47
      %s203 = scalar_select %p202, %s201, 47
      %s204 = smul.addr %s203, 8
      %s205 = scalar_lea.vmem %s1, %s204
      %p206 = pneg %p63
      %p207 = pneg %p60
      %s208 = smul.u32 16, %s16
      %p209 = scmp.lt.s32.totalorder %s208, 47
      %s210 = scalar_select %p209, %s208, 47
      %s211 = smul.addr %s210, 8
      %s212 = scalar_lea.vmem %s2, %s211
      %p213 = pneg %p89
      %p214 = pneg %p86
      %p215 = pneg %p115
      %p216 = pneg %p112
      %s217 = smul.u32 16, %s16
      %p218 = scmp.lt.s32.totalorder %s217, 47
      %s219 = scalar_select %p218, %s217, 47
      %s220 = smul.addr %s219, 8
      %s221 = scalar_lea.vmem %s3, %s220
      %p222 = pneg %p141
      %p223 = pneg %p138
      %s224 = smul.u32 16, %s16
      %p225 = scmp.lt.s32.totalorder %s224, 47
      %s226 = scalar_select %p225, %s224, 47
      %s227 = smul.addr %s226, 8
      %s228 = scalar_lea.vmem %s4, %s227
      %s229 = smul.u32 16, %s16
      %p230 = scmp.lt.s32.totalorder %s229, 47
      %s231 = scalar_select %p230, %s229, 47
      %s232 = smul.addr %s231, 8
      %s233 = scalar_lea.vmem %s0, %s232
      %s234 = smul.u32 16, %s16
      %s235 = smul.u32 16, %s16
      %p236 = scmp.lt.s32.totalorder %s235, 47
      %s237 = scalar_select %p236, %s235, 47
      %s238 = smul.addr %s237, 8
      %s239 = scalar_lea.vmem %s1, %s238
      %s240 = smul.u32 16, %s16
      %s241 = smul.u32 16, %s16
      %p242 = scmp.lt.s32.totalorder %s241, 47
      %s243 = scalar_select %p242, %s241, 47
      %s244 = smul.addr %s243, 8
      %s245 = scalar_lea.vmem %s2, %s244
      %s246 = smul.u32 16, %s16
      %s247 = smul.u32 16, %s16
      %p248 = scmp.lt.s32.totalorder %s247, 47
      %s249 = scalar_select %p248, %s247, 47
      %s250 = smul.addr %s249, 8
      %s251 = scalar_lea.vmem %s3, %s250
      %s252 = smul.u32 16, %s16
      %s253 = smul.u32 16, %s16
      %p254 = scmp.lt.s32.totalorder %s253, 47
      %s255 = scalar_select %p254, %s253, 47
      %s256 = smul.addr %s255, 8
      %s257 = scalar_lea.vmem %s4, %s256
      %s258 = smul.u32 16, %s16
      %v259 = vld [vmem:[%s233] sm:$0xff]
      %v260 = vld [vmem:[%s233 + $0x8] sm:$0xff]
      %v261 = vld [vmem:[%s233 + $0x10] sm:$0xff]
      %v262 = vld [vmem:[%s233 + $0x18] sm:$0xff]
      %v263 = vld [vmem:[%s233 + $0x20] sm:$0xff]
      %v264 = vld [vmem:[%s233 + $0x28] sm:$0xff]
      %v265 = vld [vmem:[%s233 + $0x30] sm:$0xff]
      %v266 = vld [vmem:[%s233 + $0x38] sm:$0xff]
      %v267 = vld [vmem:[%s233 + $0x40] sm:$0xff]
      %v268 = vld [vmem:[%s233 + $0x48] sm:$0xff]
      %v269 = vld [vmem:[%s233 + $0x50] sm:$0xff]
      %v270 = vld [vmem:[%s233 + $0x58] sm:$0xff]
      %v271 = vld [vmem:[%s233 + $0x60] sm:$0xff]
      %v272 = vld [vmem:[%s233 + $0x68] sm:$0xff]
      %v273 = vld [vmem:[%s233 + $0x70] sm:$0xff]
      %v274 = vld [vmem:[%s233 + $0x78] sm:$0xff]
      %v275 = vld [vmem:[%s245] sm:$0xff]
      %v276 = vld [vmem:[%s245 + $0x8] sm:$0xff]
      %v277 = vld [vmem:[%s245 + $0x10] sm:$0xff]
      %v278 = vld [vmem:[%s245 + $0x18] sm:$0xff]
      %v279 = vld [vmem:[%s245 + $0x20] sm:$0xff]
      %v280 = vld [vmem:[%s245 + $0x28] sm:$0xff]
      %v281 = vld [vmem:[%s245 + $0x30] sm:$0xff]
      %v282 = vld [vmem:[%s245 + $0x38] sm:$0xff]
      %v283 = vld [vmem:[%s245 + $0x40] sm:$0xff]
      %v284 = vld [vmem:[%s245 + $0x48] sm:$0xff]
      %v285 = vld [vmem:[%s245 + $0x50] sm:$0xff]
      %v286 = vld [vmem:[%s245 + $0x58] sm:$0xff]
      %v287 = vld [vmem:[%s245 + $0x60] sm:$0xff]
      %v288 = vld [vmem:[%s245 + $0x68] sm:$0xff]
      %v289 = vld [vmem:[%s245 + $0x70] sm:$0xff]
      %v290 = vld [vmem:[%s245 + $0x78] sm:$0xff]
      %v291 = vlaneseq
      %v292 = vand.u32 %v291, 127
      %v293 = vld [vmem:[%s239] sm:$0xff]
      %v294 = vld [vmem:[%s239 + $0x8] sm:$0xff]
      %v295 = vld [vmem:[%s239 + $0x10] sm:$0xff]
      %v296 = vld [vmem:[%s239 + $0x18] sm:$0xff]
      %v297 = vld [vmem:[%s239 + $0x20] sm:$0xff]
      %v298 = vld [vmem:[%s239 + $0x28] sm:$0xff]
      %v299 = vld [vmem:[%s239 + $0x30] sm:$0xff]
      %v300 = vld [vmem:[%s239 + $0x38] sm:$0xff]
      %v301 = vld [vmem:[%s239 + $0x40] sm:$0xff]
      %v302 = vld [vmem:[%s239 + $0x48] sm:$0xff]
      %v303 = vld [vmem:[%s239 + $0x50] sm:$0xff]
      %v304 = vld [vmem:[%s239 + $0x58] sm:$0xff]
      %v305 = vld [vmem:[%s239 + $0x60] sm:$0xff]
      %v306 = vld [vmem:[%s239 + $0x68] sm:$0xff]
      %v307 = vld [vmem:[%s239 + $0x70] sm:$0xff]
      %v308 = vld [vmem:[%s239 + $0x78] sm:$0xff]
      %vm309 = vcmp.ge.s32.totalorder %v292, 0
      %vm310 = vcmp.lt.s32.totalorder %v292, 32
      %vm311 = vmand %vm309, %vm310
      %v312 = vsel %vm311, 1, 0
      %vm313 = vcmp.eq.s32.totalorder %v312, 1
      %315 = vset.pattern.permute.xlu0 0
      %316 = vperm.xlu0 %315, %v293
      %v317 = vpop.permute.xlu0 %316
      %320 = vset.pattern.permute.xlu0 0
      %321 = vperm.xlu0 %320, %v294
      %v322 = vpop.permute.xlu0 %321
      %325 = vset.pattern.permute.xlu0 0
      %326 = vperm.xlu0 %325, %v295
      %v327 = vpop.permute.xlu0 %326
      %330 = vset.pattern.permute.xlu0 0
      %331 = vperm.xlu0 %330, %v296
      %v332 = vpop.permute.xlu0 %331
      %335 = vset.pattern.permute.xlu0 0
      %336 = vperm.xlu0 %335, %v297
      %v337 = vpop.permute.xlu0 %336
      %340 = vset.pattern.permute.xlu0 0
      %341 = vperm.xlu0 %340, %v298
      %v342 = vpop.permute.xlu0 %341
      %345 = vset.pattern.permute.xlu0 0
      %346 = vperm.xlu0 %345, %v299
      %v347 = vpop.permute.xlu0 %346
      %350 = vset.pattern.permute.xlu0 0
      %351 = vperm.xlu0 %350, %v300
      %v352 = vpop.permute.xlu0 %351
      %355 = vset.pattern.permute.xlu0 0
      %356 = vperm.xlu0 %355, %v301
      %v357 = vpop.permute.xlu0 %356
      %360 = vset.pattern.permute.xlu0 0
      %361 = vperm.xlu0 %360, %v302
      %v362 = vpop.permute.xlu0 %361
      %365 = vset.pattern.permute.xlu0 0
      %366 = vperm.xlu0 %365, %v303
      %v367 = vpop.permute.xlu0 %366
      %370 = vset.pattern.permute.xlu0 0
      %371 = vperm.xlu0 %370, %v304
      %v372 = vpop.permute.xlu0 %371
      %375 = vset.pattern.permute.xlu0 0
      %376 = vperm.xlu0 %375, %v305
      %v377 = vpop.permute.xlu0 %376
      %380 = vset.pattern.permute.xlu0 0
      %381 = vperm.xlu0 %380, %v306
      %v382 = vpop.permute.xlu0 %381
      %385 = vset.pattern.permute.xlu0 0
      %386 = vperm.xlu0 %385, %v307
      %v387 = vpop.permute.xlu0 %386
      %390 = vset.pattern.permute.xlu0 0
      %391 = vperm.xlu0 %390, %v308
      %v392 = vpop.permute.xlu0 %391
      %v394 = vsel %vm313, %v317, 0.0
      %v395 = vsel %vm313, %v322, 0.0
      %v396 = vsel %vm313, %v327, 0.0
      %v397 = vsel %vm313, %v332, 0.0
      %v398 = vsel %vm313, %v337, 0.0
      %v399 = vsel %vm313, %v342, 0.0
      %v400 = vsel %vm313, %v347, 0.0
      %v401 = vsel %vm313, %v352, 0.0
      %v402 = vsel %vm313, %v357, 0.0
      %v403 = vsel %vm313, %v362, 0.0
      %v404 = vsel %vm313, %v367, 0.0
      %v405 = vsel %vm313, %v372, 0.0
      %v406 = vsel %vm313, %v377, 0.0
      %v407 = vsel %vm313, %v382, 0.0
      %v408 = vsel %vm313, %v387, 0.0
      %v409 = vsel %vm313, %v392, 0.0
      %v410 = vmul.f32 %v259, %v275
      %v411 = vmul.f32 %v260, %v276
      %v412 = vmul.f32 %v261, %v277
      %v413 = vmul.f32 %v262, %v278
      %v414 = vmul.f32 %v263, %v279
      %v415 = vmul.f32 %v264, %v280
      %v416 = vmul.f32 %v265, %v281
      %v417 = vmul.f32 %v266, %v282
      %v418 = vmul.f32 %v267, %v283
      %v419 = vmul.f32 %v268, %v284
      %v420 = vmul.f32 %v269, %v285
      %v421 = vmul.f32 %v270, %v286
      %v422 = vmul.f32 %v271, %v287
      %v423 = vmul.f32 %v272, %v288
      %v424 = vmul.f32 %v273, %v289
      %v425 = vmul.f32 %v274, %v290
      %vm426 = vcmask 261120
      %v427 = vsel %vm426, %v410, 0.0
      %428 = vadd.xlane.f32.xlu0 %v427
      %v429 = vpop.xlane.xlu0 %428
      %v430 = vsel %vm426, %v411, 0.0
      %431 = vadd.xlane.f32.xlu0 %v430
      %v432 = vpop.xlane.xlu0 %431
      %v433 = vsel %vm426, %v412, 0.0
      %434 = vadd.xlane.f32.xlu0 %v433
      %v435 = vpop.xlane.xlu0 %434
      %v436 = vsel %vm426, %v413, 0.0
      %437 = vadd.xlane.f32.xlu0 %v436
      %v438 = vpop.xlane.xlu0 %437
      %v439 = vsel %vm426, %v414, 0.0
      %440 = vadd.xlane.f32.xlu0 %v439
      %v441 = vpop.xlane.xlu0 %440
      %v442 = vsel %vm426, %v415, 0.0
      %443 = vadd.xlane.f32.xlu0 %v442
      %v444 = vpop.xlane.xlu0 %443
      %v445 = vsel %vm426, %v416, 0.0
      %446 = vadd.xlane.f32.xlu0 %v445
      %v447 = vpop.xlane.xlu0 %446
      %v448 = vsel %vm426, %v417, 0.0
      %449 = vadd.xlane.f32.xlu0 %v448
      %v450 = vpop.xlane.xlu0 %449
      %v451 = vsel %vm426, %v418, 0.0
      %452 = vadd.xlane.f32.xlu0 %v451
      %v453 = vpop.xlane.xlu0 %452
      %v454 = vsel %vm426, %v419, 0.0
      %455 = vadd.xlane.f32.xlu0 %v454
      %v456 = vpop.xlane.xlu0 %455
      %v457 = vsel %vm426, %v420, 0.0
      %458 = vadd.xlane.f32.xlu0 %v457
      %v459 = vpop.xlane.xlu0 %458
      %v460 = vsel %vm426, %v421, 0.0
      %461 = vadd.xlane.f32.xlu0 %v460
      %v462 = vpop.xlane.xlu0 %461
      %v463 = vsel %vm426, %v422, 0.0
      %464 = vadd.xlane.f32.xlu0 %v463
      %v465 = vpop.xlane.xlu0 %464
      %v466 = vsel %vm426, %v423, 0.0
      %467 = vadd.xlane.f32.xlu0 %v466
      %v468 = vpop.xlane.xlu0 %467
      %v469 = vsel %vm426, %v424, 0.0
      %470 = vadd.xlane.f32.xlu0 %v469
      %v471 = vpop.xlane.xlu0 %470
      %v472 = vsel %vm426, %v425, 0.0
      %473 = vadd.xlane.f32.xlu0 %v472
      %v474 = vpop.xlane.xlu0 %473
      %v475 = vmul.f32 %v293, 0.17677669
      %v476 = vmul.f32 %v294, 0.17677669
      %v477 = vmul.f32 %v295, 0.17677669
      %v478 = vmul.f32 %v296, 0.17677669
      %v479 = vmul.f32 %v297, 0.17677669
      %v480 = vmul.f32 %v298, 0.17677669
      %v481 = vmul.f32 %v299, 0.17677669
      %v482 = vmul.f32 %v300, 0.17677669
      %v483 = vmul.f32 %v301, 0.17677669
      %v484 = vmul.f32 %v302, 0.17677669
      %v485 = vmul.f32 %v303, 0.17677669
      %v486 = vmul.f32 %v304, 0.17677669
      %v487 = vmul.f32 %v305, 0.17677669
      %v488 = vmul.f32 %v306, 0.17677669
      %v489 = vmul.f32 %v307, 0.17677669
      %v490 = vmul.f32 %v308, 0.17677669
      %v491 = vmul.f32 %v429, %v475
      %v492 = vmul.f32 %v432, %v476
      %v493 = vmul.f32 %v435, %v477
      %v494 = vmul.f32 %v438, %v478
      %v495 = vmul.f32 %v441, %v479
      %v496 = vmul.f32 %v444, %v480
      %v497 = vmul.f32 %v447, %v481
      %v498 = vmul.f32 %v450, %v482
      %v499 = vmul.f32 %v453, %v483
      %v500 = vmul.f32 %v456, %v484
      %v501 = vmul.f32 %v459, %v485
      %v502 = vmul.f32 %v462, %v486
      %v503 = vmul.f32 %v465, %v487
      %v504 = vmul.f32 %v468, %v488
      %v505 = vmul.f32 %v471, %v489
      %v506 = vmul.f32 %v474, %v490
      %v507 = vmin.f32 %v491, 0.0
      %v508 = vmin.f32 %v492, 0.0
      %v509 = vmin.f32 %v493, 0.0
      %v510 = vmin.f32 %v494, 0.0
      %v511 = vmin.f32 %v495, 0.0
      %v512 = vmin.f32 %v496, 0.0
      %v513 = vmin.f32 %v497, 0.0
      %v514 = vmin.f32 %v498, 0.0
      %v515 = vmin.f32 %v499, 0.0
      %v516 = vmin.f32 %v500, 0.0
      %v517 = vmin.f32 %v501, 0.0
      %v518 = vmin.f32 %v502, 0.0
      %v519 = vmin.f32 %v503, 0.0
      %v520 = vmin.f32 %v504, 0.0
      %v521 = vmin.f32 %v505, 0.0
      %v522 = vmin.f32 %v506, 0.0
      %v523 = vadd.f32 %v507, 0.0
      %v524 = vadd.f32 %v508, 0.0
      %v525 = vadd.f32 %v509, 0.0
      %v526 = vadd.f32 %v510, 0.0
      %v527 = vadd.f32 %v511, 0.0
      %v528 = vadd.f32 %v512, 0.0
      %v529 = vadd.f32 %v513, 0.0
      %v530 = vadd.f32 %v514, 0.0
      %v531 = vadd.f32 %v515, 0.0
      %v532 = vadd.f32 %v516, 0.0
      %v533 = vadd.f32 %v517, 0.0
      %v534 = vadd.f32 %v518, 0.0
      %v535 = vadd.f32 %v519, 0.0
      %v536 = vadd.f32 %v520, 0.0
      %v537 = vadd.f32 %v521, 0.0
      %v538 = vadd.f32 %v522, 0.0
      %v539 = vand.u32 2147483647, %v491
      %v540 = vand.u32 2147483647, %v492
      %v541 = vand.u32 2147483647, %v493
      %v542 = vand.u32 2147483647, %v494
      %v543 = vand.u32 2147483647, %v495
      %v544 = vand.u32 2147483647, %v496
      %v545 = vand.u32 2147483647, %v497
      %v546 = vand.u32 2147483647, %v498
      %v547 = vand.u32 2147483647, %v499
      %v548 = vand.u32 2147483647, %v500
      %v549 = vand.u32 2147483647, %v501
      %v550 = vand.u32 2147483647, %v502
      %v551 = vand.u32 2147483647, %v503
      %v552 = vand.u32 2147483647, %v504
      %v553 = vand.u32 2147483647, %v505
      %v554 = vand.u32 2147483647, %v506
      %v555 = vsub.f32 0.0, %v539
      %v556 = vsub.f32 0.0, %v540
      %v557 = vsub.f32 0.0, %v541
      %v558 = vsub.f32 0.0, %v542
      %v559 = vsub.f32 0.0, %v543
      %v560 = vsub.f32 0.0, %v544
      %v561 = vsub.f32 0.0, %v545
      %v562 = vsub.f32 0.0, %v546
      %v563 = vsub.f32 0.0, %v547
      %v564 = vsub.f32 0.0, %v548
      %v565 = vsub.f32 0.0, %v549
      %v566 = vsub.f32 0.0, %v550
      %v567 = vsub.f32 0.0, %v551
      %v568 = vsub.f32 0.0, %v552
      %v569 = vsub.f32 0.0, %v553
      %v570 = vsub.f32 0.0, %v554
      %v571 = vmul.f32 %v555, 1.442695
      %v572 = vpow.pop %v571
      %v573 = vmul.f32 %v556, 1.442695
      %v574 = vpow.pop %v573
      %v575 = vmul.f32 %v557, 1.442695
      %v576 = vpow.pop %v575
      %v577 = vmul.f32 %v558, 1.442695
      %v578 = vpow.pop %v577
      %v579 = vmul.f32 %v559, 1.442695
      %v580 = vpow.pop %v579
      %v581 = vmul.f32 %v560, 1.442695
      %v582 = vpow.pop %v581
      %v583 = vmul.f32 %v561, 1.442695
      %v584 = vpow.pop %v583
      %v585 = vmul.f32 %v562, 1.442695
      %v586 = vpow.pop %v585
      %v587 = vmul.f32 %v563, 1.442695
      %v588 = vpow.pop %v587
      %v589 = vmul.f32 %v564, 1.442695
      %v590 = vpow.pop %v589
      %v591 = vmul.f32 %v565, 1.442695
      %v592 = vpow.pop %v591
      %v593 = vmul.f32 %v566, 1.442695
      %v594 = vpow.pop %v593
      %v595 = vmul.f32 %v567, 1.442695
      %v596 = vpow.pop %v595
      %v597 = vmul.f32 %v568, 1.442695
      %v598 = vpow.pop %v597
      %v599 = vmul.f32 %v569, 1.442695
      %v600 = vpow.pop %v599
      %v601 = vmul.f32 %v570, 1.442695
      %v602 = vpow.pop %v601
      %v603 = vadd.f32 %v572, 1.0
      %v604 = vadd.f32 %v574, 1.0
      %v605 = vadd.f32 %v576, 1.0
      %v606 = vadd.f32 %v578, 1.0
      %v607 = vadd.f32 %v580, 1.0
      %v608 = vadd.f32 %v582, 1.0
      %v609 = vadd.f32 %v584, 1.0
      %v610 = vadd.f32 %v586, 1.0
      %v611 = vadd.f32 %v588, 1.0
      %v612 = vadd.f32 %v590, 1.0
      %v613 = vadd.f32 %v592, 1.0
      %v614 = vadd.f32 %v594, 1.0
      %v615 = vadd.f32 %v596, 1.0
      %v616 = vadd.f32 %v598, 1.0
      %v617 = vadd.f32 %v600, 1.0
      %v618 = vadd.f32 %v602, 1.0
      %v619 = vlog2.pop %v603
      %v620 = vmul.f32 %v619, 0.6931472
      %v621 = vlog2.pop %v604
      %v622 = vmul.f32 %v621, 0.6931472
      %v623 = vlog2.pop %v605
      %v624 = vmul.f32 %v623, 0.6931472
      %v625 = vlog2.pop %v606
      %v626 = vmul.f32 %v625, 0.6931472
      %v627 = vlog2.pop %v607
      %v628 = vmul.f32 %v627, 0.6931472
      %v629 = vlog2.pop %v608
      %v630 = vmul.f32 %v629, 0.6931472
      %v631 = vlog2.pop %v609
      %v632 = vmul.f32 %v631, 0.6931472
      %v633 = vlog2.pop %v610
      %v634 = vmul.f32 %v633, 0.6931472
      %v635 = vlog2.pop %v611
      %v636 = vmul.f32 %v635, 0.6931472
      %v637 = vlog2.pop %v612
      %v638 = vmul.f32 %v637, 0.6931472
      %v639 = vlog2.pop %v613
      %v640 = vmul.f32 %v639, 0.6931472
      %v641 = vlog2.pop %v614
      %v642 = vmul.f32 %v641, 0.6931472
      %v643 = vlog2.pop %v615
      %v644 = vmul.f32 %v643, 0.6931472
      %v645 = vlog2.pop %v616
      %v646 = vmul.f32 %v645, 0.6931472
      %v647 = vlog2.pop %v617
      %v648 = vmul.f32 %v647, 0.6931472
      %v649 = vlog2.pop %v618
      %v650 = vmul.f32 %v649, 0.6931472
      %v651 = vsub.f32 %v523, %v620
      %v652 = vsub.f32 %v524, %v622
      %v653 = vsub.f32 %v525, %v624
      %v654 = vsub.f32 %v526, %v626
      %v655 = vsub.f32 %v527, %v628
      %v656 = vsub.f32 %v528, %v630
      %v657 = vsub.f32 %v529, %v632
      %v658 = vsub.f32 %v530, %v634
      %v659 = vsub.f32 %v531, %v636
      %v660 = vsub.f32 %v532, %v638
      %v661 = vsub.f32 %v533, %v640
      %v662 = vsub.f32 %v534, %v642
      %v663 = vsub.f32 %v535, %v644
      %v664 = vsub.f32 %v536, %v646
      %v665 = vsub.f32 %v537, %v648
      %v666 = vsub.f32 %v538, %v650
      %vm667 = vcmp.ge.s32.totalorder %v292, 32
      %vm668 = vcmp.lt.s32.totalorder %v292, 64
      %vm669 = vmand %vm667, %vm668
      %v670 = vsel %vm669, 1, 0
      %vm671 = vcmp.eq.s32.totalorder %v670, 1
      %672 = vset.pattern.permute.xlu0 1
      %673 = vperm.xlu0 %672, %v293
      %v674 = vpop.permute.xlu0 %673
      %676 = vset.pattern.permute.xlu0 1
      %677 = vperm.xlu0 %676, %v294
      %v678 = vpop.permute.xlu0 %677
      %680 = vset.pattern.permute.xlu0 1
      %681 = vperm.xlu0 %680, %v295
      %v682 = vpop.permute.xlu0 %681
      %684 = vset.pattern.permute.xlu0 1
      %685 = vperm.xlu0 %684, %v296
      %v686 = vpop.permute.xlu0 %685
      %688 = vset.pattern.permute.xlu0 1
      %689 = vperm.xlu0 %688, %v297
      %v690 = vpop.permute.xlu0 %689
      %692 = vset.pattern.permute.xlu0 1
      %693 = vperm.xlu0 %692, %v298
      %v694 = vpop.permute.xlu0 %693
      %696 = vset.pattern.permute.xlu0 1
      %697 = vperm.xlu0 %696, %v299
      %v698 = vpop.permute.xlu0 %697
      %700 = vset.pattern.permute.xlu0 1
      %701 = vperm.xlu0 %700, %v300
      %v702 = vpop.permute.xlu0 %701
      %704 = vset.pattern.permute.xlu0 1
      %705 = vperm.xlu0 %704, %v301
      %v706 = vpop.permute.xlu0 %705
      %708 = vset.pattern.permute.xlu0 1
      %709 = vperm.xlu0 %708, %v302
      %v710 = vpop.permute.xlu0 %709
      %712 = vset.pattern.permute.xlu0 1
      %713 = vperm.xlu0 %712, %v303
      %v714 = vpop.permute.xlu0 %713
      %716 = vset.pattern.permute.xlu0 1
      %717 = vperm.xlu0 %716, %v304
      %v718 = vpop.permute.xlu0 %717
      %720 = vset.pattern.permute.xlu0 1
      %721 = vperm.xlu0 %720, %v305
      %v722 = vpop.permute.xlu0 %721
      %724 = vset.pattern.permute.xlu0 1
      %725 = vperm.xlu0 %724, %v306
      %v726 = vpop.permute.xlu0 %725
      %728 = vset.pattern.permute.xlu0 1
      %729 = vperm.xlu0 %728, %v307
      %v730 = vpop.permute.xlu0 %729
      %732 = vset.pattern.permute.xlu0 1
      %733 = vperm.xlu0 %732, %v308
      %v734 = vpop.permute.xlu0 %733
      %v736 = vsel %vm671, %v674, %v394
      %v737 = vsel %vm671, %v678, %v395
      %v738 = vsel %vm671, %v682, %v396
      %v739 = vsel %vm671, %v686, %v397
      %v740 = vsel %vm671, %v690, %v398
      %v741 = vsel %vm671, %v694, %v399
      %v742 = vsel %vm671, %v698, %v400
      %v743 = vsel %vm671, %v702, %v401
      %v744 = vsel %vm671, %v706, %v402
      %v745 = vsel %vm671, %v710, %v403
      %v746 = vsel %vm671, %v714, %v404
      %v747 = vsel %vm671, %v718, %v405
      %v748 = vsel %vm671, %v722, %v406
      %v749 = vsel %vm671, %v726, %v407
      %v750 = vsel %vm671, %v730, %v408
      %v751 = vsel %vm671, %v734, %v409
      %768 = vrot.lane.b32.xlu0 %v275, 96
      %v769 = vpop.permute.xlu0 %768
      %770 = vrot.lane.b32.xlu0 %v276, 96
      %v771 = vpop.permute.xlu0 %770
      %772 = vrot.lane.b32.xlu0 %v277, 96
      %v773 = vpop.permute.xlu0 %772
      %774 = vrot.lane.b32.xlu0 %v278, 96
      %v775 = vpop.permute.xlu0 %774
      %776 = vrot.lane.b32.xlu0 %v279, 96
      %v777 = vpop.permute.xlu0 %776
      %778 = vrot.lane.b32.xlu0 %v280, 96
      %v779 = vpop.permute.xlu0 %778
      %780 = vrot.lane.b32.xlu0 %v281, 96
      %v781 = vpop.permute.xlu0 %780
      %782 = vrot.lane.b32.xlu0 %v282, 96
      %v783 = vpop.permute.xlu0 %782
      %784 = vrot.lane.b32.xlu0 %v283, 96
      %v785 = vpop.permute.xlu0 %784
      %786 = vrot.lane.b32.xlu0 %v284, 96
      %v787 = vpop.permute.xlu0 %786
      %788 = vrot.lane.b32.xlu0 %v285, 96
      %v789 = vpop.permute.xlu0 %788
      %790 = vrot.lane.b32.xlu0 %v286, 96
      %v791 = vpop.permute.xlu0 %790
      %792 = vrot.lane.b32.xlu0 %v287, 96
      %v793 = vpop.permute.xlu0 %792
      %794 = vrot.lane.b32.xlu0 %v288, 96
      %v795 = vpop.permute.xlu0 %794
      %796 = vrot.lane.b32.xlu0 %v289, 96
      %v797 = vpop.permute.xlu0 %796
      %798 = vrot.lane.b32.xlu0 %v290, 96
      %v799 = vpop.permute.xlu0 %798
      %v816 = vmul.f32 %v259, %v769
      %v817 = vmul.f32 %v260, %v771
      %v818 = vmul.f32 %v261, %v773
      %v819 = vmul.f32 %v262, %v775
      %v820 = vmul.f32 %v263, %v777
      %v821 = vmul.f32 %v264, %v779
      %v822 = vmul.f32 %v265, %v781
      %v823 = vmul.f32 %v266, %v783
      %v824 = vmul.f32 %v267, %v785
      %v825 = vmul.f32 %v268, %v787
      %v826 = vmul.f32 %v269, %v789
      %v827 = vmul.f32 %v270, %v791
      %v828 = vmul.f32 %v271, %v793
      %v829 = vmul.f32 %v272, %v795
      %v830 = vmul.f32 %v273, %v797
      %v831 = vmul.f32 %v274, %v799
      %v832 = vsel %vm426, %v816, 0.0
      %833 = vadd.xlane.f32.xlu0 %v832
      %v834 = vpop.xlane.xlu0 %833
      %v835 = vsel %vm426, %v817, 0.0
      %836 = vadd.xlane.f32.xlu0 %v835
      %v837 = vpop.xlane.xlu0 %836
      %v838 = vsel %vm426, %v818, 0.0
      %839 = vadd.xlane.f32.xlu0 %v838
      %v840 = vpop.xlane.xlu0 %839
      %v841 = vsel %vm426, %v819, 0.0
      %842 = vadd.xlane.f32.xlu0 %v841
      %v843 = vpop.xlane.xlu0 %842
      %v844 = vsel %vm426, %v820, 0.0
      %845 = vadd.xlane.f32.xlu0 %v844
      %v846 = vpop.xlane.xlu0 %845
      %v847 = vsel %vm426, %v821, 0.0
      %848 = vadd.xlane.f32.xlu0 %v847
      %v849 = vpop.xlane.xlu0 %848
      %v850 = vsel %vm426, %v822, 0.0
      %851 = vadd.xlane.f32.xlu0 %v850
      %v852 = vpop.xlane.xlu0 %851
      %v853 = vsel %vm426, %v823, 0.0
      %854 = vadd.xlane.f32.xlu0 %v853
      %v855 = vpop.xlane.xlu0 %854
      %v856 = vsel %vm426, %v824, 0.0
      %857 = vadd.xlane.f32.xlu0 %v856
      %v858 = vpop.xlane.xlu0 %857
      %v859 = vsel %vm426, %v825, 0.0
      %860 = vadd.xlane.f32.xlu0 %v859
      %v861 = vpop.xlane.xlu0 %860
      %v862 = vsel %vm426, %v826, 0.0
      %863 = vadd.xlane.f32.xlu0 %v862
      %v864 = vpop.xlane.xlu0 %863
      %v865 = vsel %vm426, %v827, 0.0
      %866 = vadd.xlane.f32.xlu0 %v865
      %v867 = vpop.xlane.xlu0 %866
      %v868 = vsel %vm426, %v828, 0.0
      %869 = vadd.xlane.f32.xlu0 %v868
      %v870 = vpop.xlane.xlu0 %869
      %v871 = vsel %vm426, %v829, 0.0
      %872 = vadd.xlane.f32.xlu0 %v871
      %v873 = vpop.xlane.xlu0 %872
      %v874 = vsel %vm426, %v830, 0.0
      %875 = vadd.xlane.f32.xlu0 %v874
      %v876 = vpop.xlane.xlu0 %875
      %v877 = vsel %vm426, %v831, 0.0
      %878 = vadd.xlane.f32.xlu0 %v877
      %v879 = vpop.xlane.xlu0 %878
      %v880 = vmul.f32 %v834, %v475
      %v881 = vmul.f32 %v837, %v476
      %v882 = vmul.f32 %v840, %v477
      %v883 = vmul.f32 %v843, %v478
      %v884 = vmul.f32 %v846, %v479
      %v885 = vmul.f32 %v849, %v480
      %v886 = vmul.f32 %v852, %v481
      %v887 = vmul.f32 %v855, %v482
      %v888 = vmul.f32 %v858, %v483
      %v889 = vmul.f32 %v861, %v484
      %v890 = vmul.f32 %v864, %v485
      %v891 = vmul.f32 %v867, %v486
      %v892 = vmul.f32 %v870, %v487
      %v893 = vmul.f32 %v873, %v488
      %v894 = vmul.f32 %v876, %v489
      %v895 = vmul.f32 %v879, %v490
      %v896 = vmin.f32 %v880, 0.0
      %v897 = vmin.f32 %v881, 0.0
      %v898 = vmin.f32 %v882, 0.0
      %v899 = vmin.f32 %v883, 0.0
      %v900 = vmin.f32 %v884, 0.0
      %v901 = vmin.f32 %v885, 0.0
      %v902 = vmin.f32 %v886, 0.0
      %v903 = vmin.f32 %v887, 0.0
      %v904 = vmin.f32 %v888, 0.0
      %v905 = vmin.f32 %v889, 0.0
      %v906 = vmin.f32 %v890, 0.0
      %v907 = vmin.f32 %v891, 0.0
      %v908 = vmin.f32 %v892, 0.0
      %v909 = vmin.f32 %v893, 0.0
      %v910 = vmin.f32 %v894, 0.0
      %v911 = vmin.f32 %v895, 0.0
      %928 = vrot.lane.b32.xlu0 %v896, 127
      %v929 = vpop.permute.xlu0 %928
      %930 = vrot.lane.b32.xlu0 %v897, 127
      %v931 = vpop.permute.xlu0 %930
      %932 = vrot.lane.b32.xlu0 %v898, 127
      %v933 = vpop.permute.xlu0 %932
      %934 = vrot.lane.b32.xlu0 %v899, 127
      %v935 = vpop.permute.xlu0 %934
      %936 = vrot.lane.b32.xlu0 %v900, 127
      %v937 = vpop.permute.xlu0 %936
      %938 = vrot.lane.b32.xlu0 %v901, 127
      %v939 = vpop.permute.xlu0 %938
      %940 = vrot.lane.b32.xlu0 %v902, 127
      %v941 = vpop.permute.xlu0 %940
      %942 = vrot.lane.b32.xlu0 %v903, 127
      %v943 = vpop.permute.xlu0 %942
      %944 = vrot.lane.b32.xlu0 %v904, 127
      %v945 = vpop.permute.xlu0 %944
      %946 = vrot.lane.b32.xlu0 %v905, 127
      %v947 = vpop.permute.xlu0 %946
      %948 = vrot.lane.b32.xlu0 %v906, 127
      %v949 = vpop.permute.xlu0 %948
      %950 = vrot.lane.b32.xlu0 %v907, 127
      %v951 = vpop.permute.xlu0 %950
      %952 = vrot.lane.b32.xlu0 %v908, 127
      %v953 = vpop.permute.xlu0 %952
      %954 = vrot.lane.b32.xlu0 %v909, 127
      %v955 = vpop.permute.xlu0 %954
      %956 = vrot.lane.b32.xlu0 %v910, 127
      %v957 = vpop.permute.xlu0 %956
      %958 = vrot.lane.b32.xlu0 %v911, 127
      %v959 = vpop.permute.xlu0 %958
      %v976 = vadd.f32 %v651, %v929
      %v977 = vadd.f32 %v652, %v931
      %v978 = vadd.f32 %v653, %v933
      %v979 = vadd.f32 %v654, %v935
      %v980 = vadd.f32 %v655, %v937
      %v981 = vadd.f32 %v656, %v939
      %v982 = vadd.f32 %v657, %v941
      %v983 = vadd.f32 %v658, %v943
      %v984 = vadd.f32 %v659, %v945
      %v985 = vadd.f32 %v660, %v947
      %v986 = vadd.f32 %v661, %v949
      %v987 = vadd.f32 %v662, %v951
      %v988 = vadd.f32 %v663, %v953
      %v989 = vadd.f32 %v664, %v955
      %v990 = vadd.f32 %v665, %v957
      %v991 = vadd.f32 %v666, %v959
      %v992 = vand.u32 2147483647, %v880
      %v993 = vand.u32 2147483647, %v881
      %v994 = vand.u32 2147483647, %v882
      %v995 = vand.u32 2147483647, %v883
      %v996 = vand.u32 2147483647, %v884
      %v997 = vand.u32 2147483647, %v885
      %v998 = vand.u32 2147483647, %v886
      %v999 = vand.u32 2147483647, %v887
      %v1000 = vand.u32 2147483647, %v888
      %v1001 = vand.u32 2147483647, %v889
      %v1002 = vand.u32 2147483647, %v890
      %v1003 = vand.u32 2147483647, %v891
      %v1004 = vand.u32 2147483647, %v892
      %v1005 = vand.u32 2147483647, %v893
      %v1006 = vand.u32 2147483647, %v894
      %v1007 = vand.u32 2147483647, %v895
      %v1008 = vsub.f32 0.0, %v992
      %v1009 = vsub.f32 0.0, %v993
      %v1010 = vsub.f32 0.0, %v994
      %v1011 = vsub.f32 0.0, %v995
      %v1012 = vsub.f32 0.0, %v996
      %v1013 = vsub.f32 0.0, %v997
      %v1014 = vsub.f32 0.0, %v998
      %v1015 = vsub.f32 0.0, %v999
      %v1016 = vsub.f32 0.0, %v1000
      %v1017 = vsub.f32 0.0, %v1001
      %v1018 = vsub.f32 0.0, %v1002
      %v1019 = vsub.f32 0.0, %v1003
      %v1020 = vsub.f32 0.0, %v1004
      %v1021 = vsub.f32 0.0, %v1005
      %v1022 = vsub.f32 0.0, %v1006
      %v1023 = vsub.f32 0.0, %v1007
      %v1024 = vmul.f32 %v1008, 1.442695
      %v1025 = vpow.pop %v1024
      %v1026 = vmul.f32 %v1009, 1.442695
      %v1027 = vpow.pop %v1026
      %v1028 = vmul.f32 %v1010, 1.442695
      %v1029 = vpow.pop %v1028
      %v1030 = vmul.f32 %v1011, 1.442695
      %v1031 = vpow.pop %v1030
      %v1032 = vmul.f32 %v1012, 1.442695
      %v1033 = vpow.pop %v1032
      %v1034 = vmul.f32 %v1013, 1.442695
      %v1035 = vpow.pop %v1034
      %v1036 = vmul.f32 %v1014, 1.442695
      %v1037 = vpow.pop %v1036
      %v1038 = vmul.f32 %v1015, 1.442695
      %v1039 = vpow.pop %v1038
      %v1040 = vmul.f32 %v1016, 1.442695
      %v1041 = vpow.pop %v1040
      %v1042 = vmul.f32 %v1017, 1.442695
      %v1043 = vpow.pop %v1042
      %v1044 = vmul.f32 %v1018, 1.442695
      %v1045 = vpow.pop %v1044
      %v1046 = vmul.f32 %v1019, 1.442695
      %v1047 = vpow.pop %v1046
      %v1048 = vmul.f32 %v1020, 1.442695
      %v1049 = vpow.pop %v1048
      %v1050 = vmul.f32 %v1021, 1.442695
      %v1051 = vpow.pop %v1050
      %v1052 = vmul.f32 %v1022, 1.442695
      %v1053 = vpow.pop %v1052
      %v1054 = vmul.f32 %v1023, 1.442695
      %v1055 = vpow.pop %v1054
      %v1056 = vadd.f32 %v1025, 1.0
      %v1057 = vadd.f32 %v1027, 1.0
      %v1058 = vadd.f32 %v1029, 1.0
      %v1059 = vadd.f32 %v1031, 1.0
      %v1060 = vadd.f32 %v1033, 1.0
      %v1061 = vadd.f32 %v1035, 1.0
      %v1062 = vadd.f32 %v1037, 1.0
      %v1063 = vadd.f32 %v1039, 1.0
      %v1064 = vadd.f32 %v1041, 1.0
      %v1065 = vadd.f32 %v1043, 1.0
      %v1066 = vadd.f32 %v1045, 1.0
      %v1067 = vadd.f32 %v1047, 1.0
      %v1068 = vadd.f32 %v1049, 1.0
      %v1069 = vadd.f32 %v1051, 1.0
      %v1070 = vadd.f32 %v1053, 1.0
      %v1071 = vadd.f32 %v1055, 1.0
      %v1072 = vlog2.pop %v1056
      %v1073 = vmul.f32 %v1072, 0.6931472
      %v1074 = vlog2.pop %v1057
      %v1075 = vmul.f32 %v1074, 0.6931472
      %v1076 = vlog2.pop %v1058
      %v1077 = vmul.f32 %v1076, 0.6931472
      %v1078 = vlog2.pop %v1059
      %v1079 = vmul.f32 %v1078, 0.6931472
      %v1080 = vlog2.pop %v1060
      %v1081 = vmul.f32 %v1080, 0.6931472
      %v1082 = vlog2.pop %v1061
      %v1083 = vmul.f32 %v1082, 0.6931472
      %v1084 = vlog2.pop %v1062
      %v1085 = vmul.f32 %v1084, 0.6931472
      %v1086 = vlog2.pop %v1063
      %v1087 = vmul.f32 %v1086, 0.6931472
      %v1088 = vlog2.pop %v1064
      %v1089 = vmul.f32 %v1088, 0.6931472
      %v1090 = vlog2.pop %v1065
      %v1091 = vmul.f32 %v1090, 0.6931472
      %v1092 = vlog2.pop %v1066
      %v1093 = vmul.f32 %v1092, 0.6931472
      %v1094 = vlog2.pop %v1067
      %v1095 = vmul.f32 %v1094, 0.6931472
      %v1096 = vlog2.pop %v1068
      %v1097 = vmul.f32 %v1096, 0.6931472
      %v1098 = vlog2.pop %v1069
      %v1099 = vmul.f32 %v1098, 0.6931472
      %v1100 = vlog2.pop %v1070
      %v1101 = vmul.f32 %v1100, 0.6931472
      %v1102 = vlog2.pop %v1071
      %v1103 = vmul.f32 %v1102, 0.6931472
      %1120 = vrot.lane.b32.xlu0 %v1073, 127
      %v1121 = vpop.permute.xlu0 %1120
      %1122 = vrot.lane.b32.xlu0 %v1075, 127
      %v1123 = vpop.permute.xlu0 %1122
      %1124 = vrot.lane.b32.xlu0 %v1077, 127
      %v1125 = vpop.permute.xlu0 %1124
      %1126 = vrot.lane.b32.xlu0 %v1079, 127
      %v1127 = vpop.permute.xlu0 %1126
      %1128 = vrot.lane.b32.xlu0 %v1081, 127
      %v1129 = vpop.permute.xlu0 %1128
      %1130 = vrot.lane.b32.xlu0 %v1083, 127
      %v1131 = vpop.permute.xlu0 %1130
      %1132 = vrot.lane.b32.xlu0 %v1085, 127
      %v1133 = vpop.permute.xlu0 %1132
      %1134 = vrot.lane.b32.xlu0 %v1087, 127
      %v1135 = vpop.permute.xlu0 %1134
      %1136 = vrot.lane.b32.xlu0 %v1089, 127
      %v1137 = vpop.permute.xlu0 %1136
      %1138 = vrot.lane.b32.xlu0 %v1091, 127
      %v1139 = vpop.permute.xlu0 %1138
      %1140 = vrot.lane.b32.xlu0 %v1093, 127
      %v1141 = vpop.permute.xlu0 %1140
      %1142 = vrot.lane.b32.xlu0 %v1095, 127
      %v1143 = vpop.permute.xlu0 %1142
      %1144 = vrot.lane.b32.xlu0 %v1097, 127
      %v1145 = vpop.permute.xlu0 %1144
      %1146 = vrot.lane.b32.xlu0 %v1099, 127
      %v1147 = vpop.permute.xlu0 %1146
      %1148 = vrot.lane.b32.xlu0 %v1101, 127
      %v1149 = vpop.permute.xlu0 %1148
      %1150 = vrot.lane.b32.xlu0 %v1103, 127
      %v1151 = vpop.permute.xlu0 %1150
      %v1168 = vsub.f32 %v976, %v1121
      %v1169 = vsub.f32 %v977, %v1123
      %v1170 = vsub.f32 %v978, %v1125
      %v1171 = vsub.f32 %v979, %v1127
      %v1172 = vsub.f32 %v980, %v1129
      %v1173 = vsub.f32 %v981, %v1131
      %v1174 = vsub.f32 %v982, %v1133
      %v1175 = vsub.f32 %v983, %v1135
      %v1176 = vsub.f32 %v984, %v1137
      %v1177 = vsub.f32 %v985, %v1139
      %v1178 = vsub.f32 %v986, %v1141
      %v1179 = vsub.f32 %v987, %v1143
      %v1180 = vsub.f32 %v988, %v1145
      %v1181 = vsub.f32 %v989, %v1147
      %v1182 = vsub.f32 %v990, %v1149
      %v1183 = vsub.f32 %v991, %v1151
      %vm1184 = vcmp.ge.s32.totalorder %v292, 64
      %vm1185 = vcmp.lt.s32.totalorder %v292, 96
      %vm1186 = vmand %vm1184, %vm1185
      %v1187 = vsel %vm1186, 1, 0
      %vm1188 = vcmp.eq.s32.totalorder %v1187, 1
      %1189 = vset.pattern.permute.xlu0 2
      %1190 = vperm.xlu0 %1189, %v293
      %v1191 = vpop.permute.xlu0 %1190
      %1193 = vset.pattern.permute.xlu0 2
      %1194 = vperm.xlu0 %1193, %v294
      %v1195 = vpop.permute.xlu0 %1194
      %1197 = vset.pattern.permute.xlu0 2
      %1198 = vperm.xlu0 %1197, %v295
      %v1199 = vpop.permute.xlu0 %1198
      %1201 = vset.pattern.permute.xlu0 2
      %1202 = vperm.xlu0 %1201, %v296
      %v1203 = vpop.permute.xlu0 %1202
      %1205 = vset.pattern.permute.xlu0 2
      %1206 = vperm.xlu0 %1205, %v297
      %v1207 = vpop.permute.xlu0 %1206
      %1209 = vset.pattern.permute.xlu0 2
      %1210 = vperm.xlu0 %1209, %v298
      %v1211 = vpop.permute.xlu0 %1210
      %1213 = vset.pattern.permute.xlu0 2
      %1214 = vperm.xlu0 %1213, %v299
      %v1215 = vpop.permute.xlu0 %1214
      %1217 = vset.pattern.permute.xlu0 2
      %1218 = vperm.xlu0 %1217, %v300
      %v1219 = vpop.permute.xlu0 %1218
      %1221 = vset.pattern.permute.xlu0 2
      %1222 = vperm.xlu0 %1221, %v301
      %v1223 = vpop.permute.xlu0 %1222
      %1225 = vset.pattern.permute.xlu0 2
      %1226 = vperm.xlu0 %1225, %v302
      %v1227 = vpop.permute.xlu0 %1226
      %1229 = vset.pattern.permute.xlu0 2
      %1230 = vperm.xlu0 %1229, %v303
      %v1231 = vpop.permute.xlu0 %1230
      %1233 = vset.pattern.permute.xlu0 2
      %1234 = vperm.xlu0 %1233, %v304
      %v1235 = vpop.permute.xlu0 %1234
      %1237 = vset.pattern.permute.xlu0 2
      %1238 = vperm.xlu0 %1237, %v305
      %v1239 = vpop.permute.xlu0 %1238
      %1241 = vset.pattern.permute.xlu0 2
      %1242 = vperm.xlu0 %1241, %v306
      %v1243 = vpop.permute.xlu0 %1242
      %1245 = vset.pattern.permute.xlu0 2
      %1246 = vperm.xlu0 %1245, %v307
      %v1247 = vpop.permute.xlu0 %1246
      %1249 = vset.pattern.permute.xlu0 2
      %1250 = vperm.xlu0 %1249, %v308
      %v1251 = vpop.permute.xlu0 %1250
      %v1253 = vsel %vm1188, %v1191, %v736
      %v1254 = vsel %vm1188, %v1195, %v737
      %v1255 = vsel %vm1188, %v1199, %v738
      %v1256 = vsel %vm1188, %v1203, %v739
      %v1257 = vsel %vm1188, %v1207, %v740
      %v1258 = vsel %vm1188, %v1211, %v741
      %v1259 = vsel %vm1188, %v1215, %v742
      %v1260 = vsel %vm1188, %v1219, %v743
      %v1261 = vsel %vm1188, %v1223, %v744
      %v1262 = vsel %vm1188, %v1227, %v745
      %v1263 = vsel %vm1188, %v1231, %v746
      %v1264 = vsel %vm1188, %v1235, %v747
      %v1265 = vsel %vm1188, %v1239, %v748
      %v1266 = vsel %vm1188, %v1243, %v749
      %v1267 = vsel %vm1188, %v1247, %v750
      %v1268 = vsel %vm1188, %v1251, %v751
      %1269 = vrot.lane.b32.xlu0 %v275, 64
      %v1270 = vpop.permute.xlu0 %1269
      %1271 = vrot.lane.b32.xlu0 %v276, 64
      %v1272 = vpop.permute.xlu0 %1271
      %1273 = vrot.lane.b32.xlu0 %v277, 64
      %v1274 = vpop.permute.xlu0 %1273
      %1275 = vrot.lane.b32.xlu0 %v278, 64
      %v1276 = vpop.permute.xlu0 %1275
      %1277 = vrot.lane.b32.xlu0 %v279, 64
      %v1278 = vpop.permute.xlu0 %1277
      %1279 = vrot.lane.b32.xlu0 %v280, 64
      %v1280 = vpop.permute.xlu0 %1279
      %1281 = vrot.lane.b32.xlu0 %v281, 64
      %v1282 = vpop.permute.xlu0 %1281
      %1283 = vrot.lane.b32.xlu0 %v282, 64
      %v1284 = vpop.permute.xlu0 %1283
      %1285 = vrot.lane.b32.xlu0 %v283, 64
      %v1286 = vpop.permute.xlu0 %1285
      %1287 = vrot.lane.b32.xlu0 %v284, 64
      %v1288 = vpop.permute.xlu0 %1287
      %1289 = vrot.lane.b32.xlu0 %v285, 64
      %v1290 = vpop.permute.xlu0 %1289
      %1291 = vrot.lane.b32.xlu0 %v286, 64
      %v1292 = vpop.permute.xlu0 %1291
      %1293 = vrot.lane.b32.xlu0 %v287, 64
      %v1294 = vpop.permute.xlu0 %1293
      %1295 = vrot.lane.b32.xlu0 %v288, 64
      %v1296 = vpop.permute.xlu0 %1295
      %1297 = vrot.lane.b32.xlu0 %v289, 64
      %v1298 = vpop.permute.xlu0 %1297
      %1299 = vrot.lane.b32.xlu0 %v290, 64
      %v1300 = vpop.permute.xlu0 %1299
      %v1317 = vmul.f32 %v259, %v1270
      %v1318 = vmul.f32 %v260, %v1272
      %v1319 = vmul.f32 %v261, %v1274
      %v1320 = vmul.f32 %v262, %v1276
      %v1321 = vmul.f32 %v263, %v1278
      %v1322 = vmul.f32 %v264, %v1280
      %v1323 = vmul.f32 %v265, %v1282
      %v1324 = vmul.f32 %v266, %v1284
      %v1325 = vmul.f32 %v267, %v1286
      %v1326 = vmul.f32 %v268, %v1288
      %v1327 = vmul.f32 %v269, %v1290
      %v1328 = vmul.f32 %v270, %v1292
      %v1329 = vmul.f32 %v271, %v1294
      %v1330 = vmul.f32 %v272, %v1296
      %v1331 = vmul.f32 %v273, %v1298
      %v1332 = vmul.f32 %v274, %v1300
      %v1333 = vsel %vm426, %v1317, 0.0
      %1334 = vadd.xlane.f32.xlu0 %v1333
      %v1335 = vpop.xlane.xlu0 %1334
      %v1336 = vsel %vm426, %v1318, 0.0
      %1337 = vadd.xlane.f32.xlu0 %v1336
      %v1338 = vpop.xlane.xlu0 %1337
      %v1339 = vsel %vm426, %v1319, 0.0
      %1340 = vadd.xlane.f32.xlu0 %v1339
      %v1341 = vpop.xlane.xlu0 %1340
      %v1342 = vsel %vm426, %v1320, 0.0
      %1343 = vadd.xlane.f32.xlu0 %v1342
      %v1344 = vpop.xlane.xlu0 %1343
      %v1345 = vsel %vm426, %v1321, 0.0
      %1346 = vadd.xlane.f32.xlu0 %v1345
      %v1347 = vpop.xlane.xlu0 %1346
      %v1348 = vsel %vm426, %v1322, 0.0
      %1349 = vadd.xlane.f32.xlu0 %v1348
      %v1350 = vpop.xlane.xlu0 %1349
      %v1351 = vsel %vm426, %v1323, 0.0
      %1352 = vadd.xlane.f32.xlu0 %v1351
      %v1353 = vpop.xlane.xlu0 %1352
      %v1354 = vsel %vm426, %v1324, 0.0
      %1355 = vadd.xlane.f32.xlu0 %v1354
      %v1356 = vpop.xlane.xlu0 %1355
      %v1357 = vsel %vm426, %v1325, 0.0
      %1358 = vadd.xlane.f32.xlu0 %v1357
      %v1359 = vpop.xlane.xlu0 %1358
      %v1360 = vsel %vm426, %v1326, 0.0
      %1361 = vadd.xlane.f32.xlu0 %v1360
      %v1362 = vpop.xlane.xlu0 %1361
      %v1363 = vsel %vm426, %v1327, 0.0
      %1364 = vadd.xlane.f32.xlu0 %v1363
      %v1365 = vpop.xlane.xlu0 %1364
      %v1366 = vsel %vm426, %v1328, 0.0
      %1367 = vadd.xlane.f32.xlu0 %v1366
      %v1368 = vpop.xlane.xlu0 %1367
      %v1369 = vsel %vm426, %v1329, 0.0
      %1370 = vadd.xlane.f32.xlu0 %v1369
      %v1371 = vpop.xlane.xlu0 %1370
      %v1372 = vsel %vm426, %v1330, 0.0
      %1373 = vadd.xlane.f32.xlu0 %v1372
      %v1374 = vpop.xlane.xlu0 %1373
      %v1375 = vsel %vm426, %v1331, 0.0
      %1376 = vadd.xlane.f32.xlu0 %v1375
      %v1377 = vpop.xlane.xlu0 %1376
      %v1378 = vsel %vm426, %v1332, 0.0
      %1379 = vadd.xlane.f32.xlu0 %v1378
      %v1380 = vpop.xlane.xlu0 %1379
      %v1381 = vmul.f32 %v1335, %v475
      %v1382 = vmul.f32 %v1338, %v476
      %v1383 = vmul.f32 %v1341, %v477
      %v1384 = vmul.f32 %v1344, %v478
      %v1385 = vmul.f32 %v1347, %v479
      %v1386 = vmul.f32 %v1350, %v480
      %v1387 = vmul.f32 %v1353, %v481
      %v1388 = vmul.f32 %v1356, %v482
      %v1389 = vmul.f32 %v1359, %v483
      %v1390 = vmul.f32 %v1362, %v484
      %v1391 = vmul.f32 %v1365, %v485
      %v1392 = vmul.f32 %v1368, %v486
      %v1393 = vmul.f32 %v1371, %v487
      %v1394 = vmul.f32 %v1374, %v488
      %v1395 = vmul.f32 %v1377, %v489
      %v1396 = vmul.f32 %v1380, %v490
      %v1397 = vmin.f32 %v1381, 0.0
      %v1398 = vmin.f32 %v1382, 0.0
      %v1399 = vmin.f32 %v1383, 0.0
      %v1400 = vmin.f32 %v1384, 0.0
      %v1401 = vmin.f32 %v1385, 0.0
      %v1402 = vmin.f32 %v1386, 0.0
      %v1403 = vmin.f32 %v1387, 0.0
      %v1404 = vmin.f32 %v1388, 0.0
      %v1405 = vmin.f32 %v1389, 0.0
      %v1406 = vmin.f32 %v1390, 0.0
      %v1407 = vmin.f32 %v1391, 0.0
      %v1408 = vmin.f32 %v1392, 0.0
      %v1409 = vmin.f32 %v1393, 0.0
      %v1410 = vmin.f32 %v1394, 0.0
      %v1411 = vmin.f32 %v1395, 0.0
      %v1412 = vmin.f32 %v1396, 0.0
      %1429 = vrot.lane.b32.xlu0 %v1397, 126
      %v1430 = vpop.permute.xlu0 %1429
      %1431 = vrot.lane.b32.xlu0 %v1398, 126
      %v1432 = vpop.permute.xlu0 %1431
      %1433 = vrot.lane.b32.xlu0 %v1399, 126
      %v1434 = vpop.permute.xlu0 %1433
      %1435 = vrot.lane.b32.xlu0 %v1400, 126
      %v1436 = vpop.permute.xlu0 %1435
      %1437 = vrot.lane.b32.xlu0 %v1401, 126
      %v1438 = vpop.permute.xlu0 %1437
      %1439 = vrot.lane.b32.xlu0 %v1402, 126
      %v1440 = vpop.permute.xlu0 %1439
      %1441 = vrot.lane.b32.xlu0 %v1403, 126
      %v1442 = vpop.permute.xlu0 %1441
      %1443 = vrot.lane.b32.xlu0 %v1404, 126
      %v1444 = vpop.permute.xlu0 %1443
      %1445 = vrot.lane.b32.xlu0 %v1405, 126
      %v1446 = vpop.permute.xlu0 %1445
      %1447 = vrot.lane.b32.xlu0 %v1406, 126
      %v1448 = vpop.permute.xlu0 %1447
      %1449 = vrot.lane.b32.xlu0 %v1407, 126
      %v1450 = vpop.permute.xlu0 %1449
      %1451 = vrot.lane.b32.xlu0 %v1408, 126
      %v1452 = vpop.permute.xlu0 %1451
      %1453 = vrot.lane.b32.xlu0 %v1409, 126
      %v1454 = vpop.permute.xlu0 %1453
      %1455 = vrot.lane.b32.xlu0 %v1410, 126
      %v1456 = vpop.permute.xlu0 %1455
      %1457 = vrot.lane.b32.xlu0 %v1411, 126
      %v1458 = vpop.permute.xlu0 %1457
      %1459 = vrot.lane.b32.xlu0 %v1412, 126
      %v1460 = vpop.permute.xlu0 %1459
      %v1477 = vadd.f32 %v1168, %v1430
      %v1478 = vadd.f32 %v1169, %v1432
      %v1479 = vadd.f32 %v1170, %v1434
      %v1480 = vadd.f32 %v1171, %v1436
      %v1481 = vadd.f32 %v1172, %v1438
      %v1482 = vadd.f32 %v1173, %v1440
      %v1483 = vadd.f32 %v1174, %v1442
      %v1484 = vadd.f32 %v1175, %v1444
      %v1485 = vadd.f32 %v1176, %v1446
      %v1486 = vadd.f32 %v1177, %v1448
      %v1487 = vadd.f32 %v1178, %v1450
      %v1488 = vadd.f32 %v1179, %v1452
      %v1489 = vadd.f32 %v1180, %v1454
      %v1490 = vadd.f32 %v1181, %v1456
      %v1491 = vadd.f32 %v1182, %v1458
      %v1492 = vadd.f32 %v1183, %v1460
      %v1493 = vand.u32 2147483647, %v1381
      %v1494 = vand.u32 2147483647, %v1382
      %v1495 = vand.u32 2147483647, %v1383
      %v1496 = vand.u32 2147483647, %v1384
      %v1497 = vand.u32 2147483647, %v1385
      %v1498 = vand.u32 2147483647, %v1386
      %v1499 = vand.u32 2147483647, %v1387
      %v1500 = vand.u32 2147483647, %v1388
      %v1501 = vand.u32 2147483647, %v1389
      %v1502 = vand.u32 2147483647, %v1390
      %v1503 = vand.u32 2147483647, %v1391
      %v1504 = vand.u32 2147483647, %v1392
      %v1505 = vand.u32 2147483647, %v1393
      %v1506 = vand.u32 2147483647, %v1394
      %v1507 = vand.u32 2147483647, %v1395
      %v1508 = vand.u32 2147483647, %v1396
      %v1509 = vsub.f32 0.0, %v1493
      %v1510 = vsub.f32 0.0, %v1494
      %v1511 = vsub.f32 0.0, %v1495
      %v1512 = vsub.f32 0.0, %v1496
      %v1513 = vsub.f32 0.0, %v1497
      %v1514 = vsub.f32 0.0, %v1498
      %v1515 = vsub.f32 0.0, %v1499
      %v1516 = vsub.f32 0.0, %v1500
      %v1517 = vsub.f32 0.0, %v1501
      %v1518 = vsub.f32 0.0, %v1502
      %v1519 = vsub.f32 0.0, %v1503
      %v1520 = vsub.f32 0.0, %v1504
      %v1521 = vsub.f32 0.0, %v1505
      %v1522 = vsub.f32 0.0, %v1506
      %v1523 = vsub.f32 0.0, %v1507
      %v1524 = vsub.f32 0.0, %v1508
      %v1525 = vmul.f32 %v1509, 1.442695
      %v1526 = vpow.pop %v1525
      %v1527 = vmul.f32 %v1510, 1.442695
      %v1528 = vpow.pop %v1527
      %v1529 = vmul.f32 %v1511, 1.442695
      %v1530 = vpow.pop %v1529
      %v1531 = vmul.f32 %v1512, 1.442695
      %v1532 = vpow.pop %v1531
      %v1533 = vmul.f32 %v1513, 1.442695
      %v1534 = vpow.pop %v1533
      %v1535 = vmul.f32 %v1514, 1.442695
      %v1536 = vpow.pop %v1535
      %v1537 = vmul.f32 %v1515, 1.442695
      %v1538 = vpow.pop %v1537
      %v1539 = vmul.f32 %v1516, 1.442695
      %v1540 = vpow.pop %v1539
      %v1541 = vmul.f32 %v1517, 1.442695
      %v1542 = vpow.pop %v1541
      %v1543 = vmul.f32 %v1518, 1.442695
      %v1544 = vpow.pop %v1543
      %v1545 = vmul.f32 %v1519, 1.442695
      %v1546 = vpow.pop %v1545
      %v1547 = vmul.f32 %v1520, 1.442695
      %v1548 = vpow.pop %v1547
      %v1549 = vmul.f32 %v1521, 1.442695
      %v1550 = vpow.pop %v1549
      %v1551 = vmul.f32 %v1522, 1.442695
      %v1552 = vpow.pop %v1551
      %v1553 = vmul.f32 %v1523, 1.442695
      %v1554 = vpow.pop %v1553
      %v1555 = vmul.f32 %v1524, 1.442695
      %v1556 = vpow.pop %v1555
      %v1557 = vadd.f32 %v1526, 1.0
      %v1558 = vadd.f32 %v1528, 1.0
      %v1559 = vadd.f32 %v1530, 1.0
      %v1560 = vadd.f32 %v1532, 1.0
      %v1561 = vadd.f32 %v1534, 1.0
      %v1562 = vadd.f32 %v1536, 1.0
      %v1563 = vadd.f32 %v1538, 1.0
      %v1564 = vadd.f32 %v1540, 1.0
      %v1565 = vadd.f32 %v1542, 1.0
      %v1566 = vadd.f32 %v1544, 1.0
      %v1567 = vadd.f32 %v1546, 1.0
      %v1568 = vadd.f32 %v1548, 1.0
      %v1569 = vadd.f32 %v1550, 1.0
      %v1570 = vadd.f32 %v1552, 1.0
      %v1571 = vadd.f32 %v1554, 1.0
      %v1572 = vadd.f32 %v1556, 1.0
      %v1573 = vlog2.pop %v1557
      %v1574 = vmul.f32 %v1573, 0.6931472
      %v1575 = vlog2.pop %v1558
      %v1576 = vmul.f32 %v1575, 0.6931472
      %v1577 = vlog2.pop %v1559
      %v1578 = vmul.f32 %v1577, 0.6931472
      %v1579 = vlog2.pop %v1560
      %v1580 = vmul.f32 %v1579, 0.6931472
      %v1581 = vlog2.pop %v1561
      %v1582 = vmul.f32 %v1581, 0.6931472
      %v1583 = vlog2.pop %v1562
      %v1584 = vmul.f32 %v1583, 0.6931472
      %v1585 = vlog2.pop %v1563
      %v1586 = vmul.f32 %v1585, 0.6931472
      %v1587 = vlog2.pop %v1564
      %v1588 = vmul.f32 %v1587, 0.6931472
      %v1589 = vlog2.pop %v1565
      %v1590 = vmul.f32 %v1589, 0.6931472
      %v1591 = vlog2.pop %v1566
      %v1592 = vmul.f32 %v1591, 0.6931472
      %v1593 = vlog2.pop %v1567
      %v1594 = vmul.f32 %v1593, 0.6931472
      %v1595 = vlog2.pop %v1568
      %v1596 = vmul.f32 %v1595, 0.6931472
      %v1597 = vlog2.pop %v1569
      %v1598 = vmul.f32 %v1597, 0.6931472
      %v1599 = vlog2.pop %v1570
      %v1600 = vmul.f32 %v1599, 0.6931472
      %v1601 = vlog2.pop %v1571
      %v1602 = vmul.f32 %v1601, 0.6931472
      %v1603 = vlog2.pop %v1572
      %v1604 = vmul.f32 %v1603, 0.6931472
      %1621 = vrot.lane.b32.xlu0 %v1574, 126
      %v1622 = vpop.permute.xlu0 %1621
      %1623 = vrot.lane.b32.xlu0 %v1576, 126
      %v1624 = vpop.permute.xlu0 %1623
      %1625 = vrot.lane.b32.xlu0 %v1578, 126
      %v1626 = vpop.permute.xlu0 %1625
      %1627 = vrot.lane.b32.xlu0 %v1580, 126
      %v1628 = vpop.permute.xlu0 %1627
      %1629 = vrot.lane.b32.xlu0 %v1582, 126
      %v1630 = vpop.permute.xlu0 %1629
      %1631 = vrot.lane.b32.xlu0 %v1584, 126
      %v1632 = vpop.permute.xlu0 %1631
      %1633 = vrot.lane.b32.xlu0 %v1586, 126
      %v1634 = vpop.permute.xlu0 %1633
      %1635 = vrot.lane.b32.xlu0 %v1588, 126
      %v1636 = vpop.permute.xlu0 %1635
      %1637 = vrot.lane.b32.xlu0 %v1590, 126
      %v1638 = vpop.permute.xlu0 %1637
      %1639 = vrot.lane.b32.xlu0 %v1592, 126
      %v1640 = vpop.permute.xlu0 %1639
      %1641 = vrot.lane.b32.xlu0 %v1594, 126
      %v1642 = vpop.permute.xlu0 %1641
      %1643 = vrot.lane.b32.xlu0 %v1596, 126
      %v1644 = vpop.permute.xlu0 %1643
      %1645 = vrot.lane.b32.xlu0 %v1598, 126
      %v1646 = vpop.permute.xlu0 %1645
      %1647 = vrot.lane.b32.xlu0 %v1600, 126
      %v1648 = vpop.permute.xlu0 %1647
      %1649 = vrot.lane.b32.xlu0 %v1602, 126
      %v1650 = vpop.permute.xlu0 %1649
      %1651 = vrot.lane.b32.xlu0 %v1604, 126
      %v1652 = vpop.permute.xlu0 %1651
      %v1669 = vsub.f32 %v1477, %v1622
      %v1670 = vsub.f32 %v1478, %v1624
      %v1671 = vsub.f32 %v1479, %v1626
      %v1672 = vsub.f32 %v1480, %v1628
      %v1673 = vsub.f32 %v1481, %v1630
      %v1674 = vsub.f32 %v1482, %v1632
      %v1675 = vsub.f32 %v1483, %v1634
      %v1676 = vsub.f32 %v1484, %v1636
      %v1677 = vsub.f32 %v1485, %v1638
      %v1678 = vsub.f32 %v1486, %v1640
      %v1679 = vsub.f32 %v1487, %v1642
      %v1680 = vsub.f32 %v1488, %v1644
      %v1681 = vsub.f32 %v1489, %v1646
      %v1682 = vsub.f32 %v1490, %v1648
      %v1683 = vsub.f32 %v1491, %v1650
      %v1684 = vsub.f32 %v1492, %v1652
      %vm1685 = vcmp.ge.s32.totalorder %v292, 96
      %vm1686 = vcmp.lt.s32.totalorder %v292, 128
      %vm1687 = vmand %vm1685, %vm1686
      %v1688 = vsel %vm1687, 1, 0
      %vm1689 = vcmp.eq.s32.totalorder %v1688, 1
      %1690 = vset.pattern.permute.xlu0 3
      %1691 = vperm.xlu0 %1690, %v293
      %v1692 = vpop.permute.xlu0 %1691
      %1694 = vset.pattern.permute.xlu0 3
      %1695 = vperm.xlu0 %1694, %v294
      %v1696 = vpop.permute.xlu0 %1695
      %1698 = vset.pattern.permute.xlu0 3
      %1699 = vperm.xlu0 %1698, %v295
      %v1700 = vpop.permute.xlu0 %1699
      %1702 = vset.pattern.permute.xlu0 3
      %1703 = vperm.xlu0 %1702, %v296
      %v1704 = vpop.permute.xlu0 %1703
      %1706 = vset.pattern.permute.xlu0 3
      %1707 = vperm.xlu0 %1706, %v297
      %v1708 = vpop.permute.xlu0 %1707
      %1710 = vset.pattern.permute.xlu0 3
      %1711 = vperm.xlu0 %1710, %v298
      %v1712 = vpop.permute.xlu0 %1711
      %1714 = vset.pattern.permute.xlu0 3
      %1715 = vperm.xlu0 %1714, %v299
      %v1716 = vpop.permute.xlu0 %1715
      %1718 = vset.pattern.permute.xlu0 3
      %1719 = vperm.xlu0 %1718, %v300
      %v1720 = vpop.permute.xlu0 %1719
      %1722 = vset.pattern.permute.xlu0 3
      %1723 = vperm.xlu0 %1722, %v301
      %v1724 = vpop.permute.xlu0 %1723
      %1726 = vset.pattern.permute.xlu0 3
      %1727 = vperm.xlu0 %1726, %v302
      %v1728 = vpop.permute.xlu0 %1727
      %1730 = vset.pattern.permute.xlu0 3
      %1731 = vperm.xlu0 %1730, %v303
      %v1732 = vpop.permute.xlu0 %1731
      %1734 = vset.pattern.permute.xlu0 3
      %1735 = vperm.xlu0 %1734, %v304
      %v1736 = vpop.permute.xlu0 %1735
      %1738 = vset.pattern.permute.xlu0 3
      %1739 = vperm.xlu0 %1738, %v305
      %v1740 = vpop.permute.xlu0 %1739
      %1742 = vset.pattern.permute.xlu0 3
      %1743 = vperm.xlu0 %1742, %v306
      %v1744 = vpop.permute.xlu0 %1743
      %1746 = vset.pattern.permute.xlu0 3
      %1747 = vperm.xlu0 %1746, %v307
      %v1748 = vpop.permute.xlu0 %1747
      %1750 = vset.pattern.permute.xlu0 3
      %1751 = vperm.xlu0 %1750, %v308
      %v1752 = vpop.permute.xlu0 %1751
      %v1754 = vsel %vm1689, %v1692, %v1253
      %v1755 = vsel %vm1689, %v1696, %v1254
      %v1756 = vsel %vm1689, %v1700, %v1255
      %v1757 = vsel %vm1689, %v1704, %v1256
      %v1758 = vsel %vm1689, %v1708, %v1257
      %v1759 = vsel %vm1689, %v1712, %v1258
      %v1760 = vsel %vm1689, %v1716, %v1259
      %v1761 = vsel %vm1689, %v1720, %v1260
      %v1762 = vsel %vm1689, %v1724, %v1261
      %v1763 = vsel %vm1689, %v1728, %v1262
      %v1764 = vsel %vm1689, %v1732, %v1263
      %v1765 = vsel %vm1689, %v1736, %v1264
      %v1766 = vsel %vm1689, %v1740, %v1265
      %v1767 = vsel %vm1689, %v1744, %v1266
      %v1768 = vsel %vm1689, %v1748, %v1267
      %v1769 = vsel %vm1689, %v1752, %v1268
      %1770 = vrot.lane.b32.xlu0 %v275, 32
      %v1771 = vpop.permute.xlu0 %1770
      %1772 = vrot.lane.b32.xlu0 %v276, 32
      %v1773 = vpop.permute.xlu0 %1772
      %1774 = vrot.lane.b32.xlu0 %v277, 32
      %v1775 = vpop.permute.xlu0 %1774
      %1776 = vrot.lane.b32.xlu0 %v278, 32
      %v1777 = vpop.permute.xlu0 %1776
      %1778 = vrot.lane.b32.xlu0 %v279, 32
      %v1779 = vpop.permute.xlu0 %1778
      %1780 = vrot.lane.b32.xlu0 %v280, 32
      %v1781 = vpop.permute.xlu0 %1780
      %1782 = vrot.lane.b32.xlu0 %v281, 32
      %v1783 = vpop.permute.xlu0 %1782
      %1784 = vrot.lane.b32.xlu0 %v282, 32
      %v1785 = vpop.permute.xlu0 %1784
      %1786 = vrot.lane.b32.xlu0 %v283, 32
      %v1787 = vpop.permute.xlu0 %1786
      %1788 = vrot.lane.b32.xlu0 %v284, 32
      %v1789 = vpop.permute.xlu0 %1788
      %1790 = vrot.lane.b32.xlu0 %v285, 32
      %v1791 = vpop.permute.xlu0 %1790
      %1792 = vrot.lane.b32.xlu0 %v286, 32
      %v1793 = vpop.permute.xlu0 %1792
      %1794 = vrot.lane.b32.xlu0 %v287, 32
      %v1795 = vpop.permute.xlu0 %1794
      %1796 = vrot.lane.b32.xlu0 %v288, 32
      %v1797 = vpop.permute.xlu0 %1796
      %1798 = vrot.lane.b32.xlu0 %v289, 32
      %v1799 = vpop.permute.xlu0 %1798
      %1800 = vrot.lane.b32.xlu0 %v290, 32
      %v1801 = vpop.permute.xlu0 %1800
      %v1818 = vmul.f32 %v259, %v1771
      %v1819 = vmul.f32 %v260, %v1773
      %v1820 = vmul.f32 %v261, %v1775
      %v1821 = vmul.f32 %v262, %v1777
      %v1822 = vmul.f32 %v263, %v1779
      %v1823 = vmul.f32 %v264, %v1781
      %v1824 = vmul.f32 %v265, %v1783
      %v1825 = vmul.f32 %v266, %v1785
      %v1826 = vmul.f32 %v267, %v1787
      %v1827 = vmul.f32 %v268, %v1789
      %v1828 = vmul.f32 %v269, %v1791
      %v1829 = vmul.f32 %v270, %v1793
      %v1830 = vmul.f32 %v271, %v1795
      %v1831 = vmul.f32 %v272, %v1797
      %v1832 = vmul.f32 %v273, %v1799
      %v1833 = vmul.f32 %v274, %v1801
      %v1834 = vsel %vm426, %v1818, 0.0
      %1835 = vadd.xlane.f32.xlu0 %v1834
      %v1836 = vpop.xlane.xlu0 %1835
      %v1837 = vsel %vm426, %v1819, 0.0
      %1838 = vadd.xlane.f32.xlu0 %v1837
      %v1839 = vpop.xlane.xlu0 %1838
      %v1840 = vsel %vm426, %v1820, 0.0
      %1841 = vadd.xlane.f32.xlu0 %v1840
      %v1842 = vpop.xlane.xlu0 %1841
      %v1843 = vsel %vm426, %v1821, 0.0
      %1844 = vadd.xlane.f32.xlu0 %v1843
      %v1845 = vpop.xlane.xlu0 %1844
      %v1846 = vsel %vm426, %v1822, 0.0
      %1847 = vadd.xlane.f32.xlu0 %v1846
      %v1848 = vpop.xlane.xlu0 %1847
      %v1849 = vsel %vm426, %v1823, 0.0
      %1850 = vadd.xlane.f32.xlu0 %v1849
      %v1851 = vpop.xlane.xlu0 %1850
      %v1852 = vsel %vm426, %v1824, 0.0
      %1853 = vadd.xlane.f32.xlu0 %v1852
      %v1854 = vpop.xlane.xlu0 %1853
      %v1855 = vsel %vm426, %v1825, 0.0
      %1856 = vadd.xlane.f32.xlu0 %v1855
      %v1857 = vpop.xlane.xlu0 %1856
      %v1858 = vsel %vm426, %v1826, 0.0
      %1859 = vadd.xlane.f32.xlu0 %v1858
      %v1860 = vpop.xlane.xlu0 %1859
      %v1861 = vsel %vm426, %v1827, 0.0
      %1862 = vadd.xlane.f32.xlu0 %v1861
      %v1863 = vpop.xlane.xlu0 %1862
      %v1864 = vsel %vm426, %v1828, 0.0
      %1865 = vadd.xlane.f32.xlu0 %v1864
      %v1866 = vpop.xlane.xlu0 %1865
      %v1867 = vsel %vm426, %v1829, 0.0
      %1868 = vadd.xlane.f32.xlu0 %v1867
      %v1869 = vpop.xlane.xlu0 %1868
      %v1870 = vsel %vm426, %v1830, 0.0
      %1871 = vadd.xlane.f32.xlu0 %v1870
      %v1872 = vpop.xlane.xlu0 %1871
      %v1873 = vsel %vm426, %v1831, 0.0
      %1874 = vadd.xlane.f32.xlu0 %v1873
      %v1875 = vpop.xlane.xlu0 %1874
      %v1876 = vsel %vm426, %v1832, 0.0
      %1877 = vadd.xlane.f32.xlu0 %v1876
      %v1878 = vpop.xlane.xlu0 %1877
      %v1879 = vsel %vm426, %v1833, 0.0
      %1880 = vadd.xlane.f32.xlu0 %v1879
      %v1881 = vpop.xlane.xlu0 %1880
      %v1882 = vmul.f32 %v1836, %v475
      %v1883 = vmul.f32 %v1839, %v476
      %v1884 = vmul.f32 %v1842, %v477
      %v1885 = vmul.f32 %v1845, %v478
      %v1886 = vmul.f32 %v1848, %v479
      %v1887 = vmul.f32 %v1851, %v480
      %v1888 = vmul.f32 %v1854, %v481
      %v1889 = vmul.f32 %v1857, %v482
      %v1890 = vmul.f32 %v1860, %v483
      %v1891 = vmul.f32 %v1863, %v484
      %v1892 = vmul.f32 %v1866, %v485
      %v1893 = vmul.f32 %v1869, %v486
      %v1894 = vmul.f32 %v1872, %v487
      %v1895 = vmul.f32 %v1875, %v488
      %v1896 = vmul.f32 %v1878, %v489
      %v1897 = vmul.f32 %v1881, %v490
      %v1898 = vmin.f32 %v1882, 0.0
      %v1899 = vmin.f32 %v1883, 0.0
      %v1900 = vmin.f32 %v1884, 0.0
      %v1901 = vmin.f32 %v1885, 0.0
      %v1902 = vmin.f32 %v1886, 0.0
      %v1903 = vmin.f32 %v1887, 0.0
      %v1904 = vmin.f32 %v1888, 0.0
      %v1905 = vmin.f32 %v1889, 0.0
      %v1906 = vmin.f32 %v1890, 0.0
      %v1907 = vmin.f32 %v1891, 0.0
      %v1908 = vmin.f32 %v1892, 0.0
      %v1909 = vmin.f32 %v1893, 0.0
      %v1910 = vmin.f32 %v1894, 0.0
      %v1911 = vmin.f32 %v1895, 0.0
      %v1912 = vmin.f32 %v1896, 0.0
      %v1913 = vmin.f32 %v1897, 0.0
      %1930 = vrot.lane.b32.xlu0 %v1898, 125
      %v1931 = vpop.permute.xlu0 %1930
      %1932 = vrot.lane.b32.xlu0 %v1899, 125
      %v1933 = vpop.permute.xlu0 %1932
      %1934 = vrot.lane.b32.xlu0 %v1900, 125
      %v1935 = vpop.permute.xlu0 %1934
      %1936 = vrot.lane.b32.xlu0 %v1901, 125
      %v1937 = vpop.permute.xlu0 %1936
      %1938 = vrot.lane.b32.xlu0 %v1902, 125
      %v1939 = vpop.permute.xlu0 %1938
      %1940 = vrot.lane.b32.xlu0 %v1903, 125
      %v1941 = vpop.permute.xlu0 %1940
      %1942 = vrot.lane.b32.xlu0 %v1904, 125
      %v1943 = vpop.permute.xlu0 %1942
      %1944 = vrot.lane.b32.xlu0 %v1905, 125
      %v1945 = vpop.permute.xlu0 %1944
      %1946 = vrot.lane.b32.xlu0 %v1906, 125
      %v1947 = vpop.permute.xlu0 %1946
      %1948 = vrot.lane.b32.xlu0 %v1907, 125
      %v1949 = vpop.permute.xlu0 %1948
      %1950 = vrot.lane.b32.xlu0 %v1908, 125
      %v1951 = vpop.permute.xlu0 %1950
      %1952 = vrot.lane.b32.xlu0 %v1909, 125
      %v1953 = vpop.permute.xlu0 %1952
      %1954 = vrot.lane.b32.xlu0 %v1910, 125
      %v1955 = vpop.permute.xlu0 %1954
      %1956 = vrot.lane.b32.xlu0 %v1911, 125
      %v1957 = vpop.permute.xlu0 %1956
      %1958 = vrot.lane.b32.xlu0 %v1912, 125
      %v1959 = vpop.permute.xlu0 %1958
      %1960 = vrot.lane.b32.xlu0 %v1913, 125
      %v1961 = vpop.permute.xlu0 %1960
      %v1978 = vadd.f32 %v1669, %v1931
      %v1979 = vadd.f32 %v1670, %v1933
      %v1980 = vadd.f32 %v1671, %v1935
      %v1981 = vadd.f32 %v1672, %v1937
      %v1982 = vadd.f32 %v1673, %v1939
      %v1983 = vadd.f32 %v1674, %v1941
      %v1984 = vadd.f32 %v1675, %v1943
      %v1985 = vadd.f32 %v1676, %v1945
      %v1986 = vadd.f32 %v1677, %v1947
      %v1987 = vadd.f32 %v1678, %v1949
      %v1988 = vadd.f32 %v1679, %v1951
      %v1989 = vadd.f32 %v1680, %v1953
      %v1990 = vadd.f32 %v1681, %v1955
      %v1991 = vadd.f32 %v1682, %v1957
      %v1992 = vadd.f32 %v1683, %v1959
      %v1993 = vadd.f32 %v1684, %v1961
      %v1994 = vand.u32 2147483647, %v1882
      %v1995 = vand.u32 2147483647, %v1883
      %v1996 = vand.u32 2147483647, %v1884
      %v1997 = vand.u32 2147483647, %v1885
      %v1998 = vand.u32 2147483647, %v1886
      %v1999 = vand.u32 2147483647, %v1887
      %v2000 = vand.u32 2147483647, %v1888
      %v2001 = vand.u32 2147483647, %v1889
      %v2002 = vand.u32 2147483647, %v1890
      %v2003 = vand.u32 2147483647, %v1891
      %v2004 = vand.u32 2147483647, %v1892
      %v2005 = vand.u32 2147483647, %v1893
      %v2006 = vand.u32 2147483647, %v1894
      %v2007 = vand.u32 2147483647, %v1895
      %v2008 = vand.u32 2147483647, %v1896
      %v2009 = vand.u32 2147483647, %v1897
      %v2010 = vsub.f32 0.0, %v1994
      %v2011 = vsub.f32 0.0, %v1995
      %v2012 = vsub.f32 0.0, %v1996
      %v2013 = vsub.f32 0.0, %v1997
      %v2014 = vsub.f32 0.0, %v1998
      %v2015 = vsub.f32 0.0, %v1999
      %v2016 = vsub.f32 0.0, %v2000
      %v2017 = vsub.f32 0.0, %v2001
      %v2018 = vsub.f32 0.0, %v2002
      %v2019 = vsub.f32 0.0, %v2003
      %v2020 = vsub.f32 0.0, %v2004
      %v2021 = vsub.f32 0.0, %v2005
      %v2022 = vsub.f32 0.0, %v2006
      %v2023 = vsub.f32 0.0, %v2007
      %v2024 = vsub.f32 0.0, %v2008
      %v2025 = vsub.f32 0.0, %v2009
      %v2026 = vmul.f32 %v2010, 1.442695
      %v2027 = vpow.pop %v2026
      %v2028 = vmul.f32 %v2011, 1.442695
      %v2029 = vpow.pop %v2028
      %v2030 = vmul.f32 %v2012, 1.442695
      %v2031 = vpow.pop %v2030
      %v2032 = vmul.f32 %v2013, 1.442695
      %v2033 = vpow.pop %v2032
      %v2034 = vmul.f32 %v2014, 1.442695
      %v2035 = vpow.pop %v2034
      %v2036 = vmul.f32 %v2015, 1.442695
      %v2037 = vpow.pop %v2036
      %v2038 = vmul.f32 %v2016, 1.442695
      %v2039 = vpow.pop %v2038
      %v2040 = vmul.f32 %v2017, 1.442695
      %v2041 = vpow.pop %v2040
      %v2042 = vmul.f32 %v2018, 1.442695
      %v2043 = vpow.pop %v2042
      %v2044 = vmul.f32 %v2019, 1.442695
      %v2045 = vpow.pop %v2044
      %v2046 = vmul.f32 %v2020, 1.442695
      %v2047 = vpow.pop %v2046
      %v2048 = vmul.f32 %v2021, 1.442695
      %v2049 = vpow.pop %v2048
      %v2050 = vmul.f32 %v2022, 1.442695
      %v2051 = vpow.pop %v2050
      %v2052 = vmul.f32 %v2023, 1.442695
      %v2053 = vpow.pop %v2052
      %v2054 = vmul.f32 %v2024, 1.442695
      %v2055 = vpow.pop %v2054
      %v2056 = vmul.f32 %v2025, 1.442695
      %v2057 = vpow.pop %v2056
      %v2058 = vadd.f32 %v2027, 1.0
      %v2059 = vadd.f32 %v2029, 1.0
      %v2060 = vadd.f32 %v2031, 1.0
      %v2061 = vadd.f32 %v2033, 1.0
      %v2062 = vadd.f32 %v2035, 1.0
      %v2063 = vadd.f32 %v2037, 1.0
      %v2064 = vadd.f32 %v2039, 1.0
      %v2065 = vadd.f32 %v2041, 1.0
      %v2066 = vadd.f32 %v2043, 1.0
      %v2067 = vadd.f32 %v2045, 1.0
      %v2068 = vadd.f32 %v2047, 1.0
      %v2069 = vadd.f32 %v2049, 1.0
      %v2070 = vadd.f32 %v2051, 1.0
      %v2071 = vadd.f32 %v2053, 1.0
      %v2072 = vadd.f32 %v2055, 1.0
      %v2073 = vadd.f32 %v2057, 1.0
      %v2074 = vlog2.pop %v2058
      %v2075 = vmul.f32 %v2074, 0.6931472
      %v2076 = vlog2.pop %v2059
      %v2077 = vmul.f32 %v2076, 0.6931472
      %v2078 = vlog2.pop %v2060
      %v2079 = vmul.f32 %v2078, 0.6931472
      %v2080 = vlog2.pop %v2061
      %v2081 = vmul.f32 %v2080, 0.6931472
      %v2082 = vlog2.pop %v2062
      %v2083 = vmul.f32 %v2082, 0.6931472
      %v2084 = vlog2.pop %v2063
      %v2085 = vmul.f32 %v2084, 0.6931472
      %v2086 = vlog2.pop %v2064
      %v2087 = vmul.f32 %v2086, 0.6931472
      %v2088 = vlog2.pop %v2065
      %v2089 = vmul.f32 %v2088, 0.6931472
      %v2090 = vlog2.pop %v2066
      %v2091 = vmul.f32 %v2090, 0.6931472
      %v2092 = vlog2.pop %v2067
      %v2093 = vmul.f32 %v2092, 0.6931472
      %v2094 = vlog2.pop %v2068
      %v2095 = vmul.f32 %v2094, 0.6931472
      %v2096 = vlog2.pop %v2069
      %v2097 = vmul.f32 %v2096, 0.6931472
      %v2098 = vlog2.pop %v2070
      %v2099 = vmul.f32 %v2098, 0.6931472
      %v2100 = vlog2.pop %v2071
      %v2101 = vmul.f32 %v2100, 0.6931472
      %v2102 = vlog2.pop %v2072
      %v2103 = vmul.f32 %v2102, 0.6931472
      %v2104 = vlog2.pop %v2073
      %v2105 = vmul.f32 %v2104, 0.6931472
      %2122 = vrot.lane.b32.xlu0 %v2075, 125
      %v2123 = vpop.permute.xlu0 %2122
      %2124 = vrot.lane.b32.xlu0 %v2077, 125
      %v2125 = vpop.permute.xlu0 %2124
      %2126 = vrot.lane.b32.xlu0 %v2079, 125
      %v2127 = vpop.permute.xlu0 %2126
      %2128 = vrot.lane.b32.xlu0 %v2081, 125
      %v2129 = vpop.permute.xlu0 %2128
      %2130 = vrot.lane.b32.xlu0 %v2083, 125
      %v2131 = vpop.permute.xlu0 %2130
      %2132 = vrot.lane.b32.xlu0 %v2085, 125
      %v2133 = vpop.permute.xlu0 %2132
      %2134 = vrot.lane.b32.xlu0 %v2087, 125
      %v2135 = vpop.permute.xlu0 %2134
      %2136 = vrot.lane.b32.xlu0 %v2089, 125
      %v2137 = vpop.permute.xlu0 %2136
      %2138 = vrot.lane.b32.xlu0 %v2091, 125
      %v2139 = vpop.permute.xlu0 %2138
      %2140 = vrot.lane.b32.xlu0 %v2093, 125
      %v2141 = vpop.permute.xlu0 %2140
      %2142 = vrot.lane.b32.xlu0 %v2095, 125
      %v2143 = vpop.permute.xlu0 %2142
      %2144 = vrot.lane.b32.xlu0 %v2097, 125
      %v2145 = vpop.permute.xlu0 %2144
      %2146 = vrot.lane.b32.xlu0 %v2099, 125
      %v2147 = vpop.permute.xlu0 %2146
      %2148 = vrot.lane.b32.xlu0 %v2101, 125
      %v2149 = vpop.permute.xlu0 %2148
      %2150 = vrot.lane.b32.xlu0 %v2103, 125
      %v2151 = vpop.permute.xlu0 %2150
      %2152 = vrot.lane.b32.xlu0 %v2105, 125
      %v2153 = vpop.permute.xlu0 %2152
      %v2170 = vsub.f32 %v1978, %v2123
      %v2171 = vsub.f32 %v1979, %v2125
      %v2172 = vsub.f32 %v1980, %v2127
      %v2173 = vsub.f32 %v1981, %v2129
      %v2174 = vsub.f32 %v1982, %v2131
      %v2175 = vsub.f32 %v1983, %v2133
      %v2176 = vsub.f32 %v1984, %v2135
      %v2177 = vsub.f32 %v1985, %v2137
      %v2178 = vsub.f32 %v1986, %v2139
      %v2179 = vsub.f32 %v1987, %v2141
      %v2180 = vsub.f32 %v1988, %v2143
      %v2181 = vsub.f32 %v1989, %v2145
      %v2182 = vsub.f32 %v1990, %v2147
      %v2183 = vsub.f32 %v1991, %v2149
      %v2184 = vsub.f32 %v1992, %v2151
      %v2185 = vsub.f32 %v1993, %v2153
      %v2186 = vmul.f32 %v275, %v1754
      %v2187 = vmul.f32 %v276, %v1755
      %v2188 = vmul.f32 %v277, %v1756
      %v2189 = vmul.f32 %v278, %v1757
      %v2190 = vmul.f32 %v279, %v1758
      %v2191 = vmul.f32 %v280, %v1759
      %v2192 = vmul.f32 %v281, %v1760
      %v2193 = vmul.f32 %v282, %v1761
      %v2194 = vmul.f32 %v283, %v1762
      %v2195 = vmul.f32 %v284, %v1763
      %v2196 = vmul.f32 %v285, %v1764
      %v2197 = vmul.f32 %v286, %v1765
      %v2198 = vmul.f32 %v287, %v1766
      %v2199 = vmul.f32 %v288, %v1767
      %v2200 = vmul.f32 %v289, %v1768
      %v2201 = vmul.f32 %v290, %v1769
      %2202 = vst [vmem:[%s251] sm:$0xff] %v2186
      %2203 = vst [vmem:[%s251 + $0x8] sm:$0xff] %v2187
      %2204 = vst [vmem:[%s251 + $0x10] sm:$0xff] %v2188
      %2205 = vst [vmem:[%s251 + $0x18] sm:$0xff] %v2189
      %2206 = vst [vmem:[%s251 + $0x20] sm:$0xff] %v2190
      %2207 = vst [vmem:[%s251 + $0x28] sm:$0xff] %v2191
      %2208 = vst [vmem:[%s251 + $0x30] sm:$0xff] %v2192
      %2209 = vst [vmem:[%s251 + $0x38] sm:$0xff] %v2193
      %2210 = vst [vmem:[%s251 + $0x40] sm:$0xff] %v2194
      %2211 = vst [vmem:[%s251 + $0x48] sm:$0xff] %v2195
      %2212 = vst [vmem:[%s251 + $0x50] sm:$0xff] %v2196
      %2213 = vst [vmem:[%s251 + $0x58] sm:$0xff] %v2197
      %2214 = vst [vmem:[%s251 + $0x60] sm:$0xff] %v2198
      %2215 = vst [vmem:[%s251 + $0x68] sm:$0xff] %v2199
      %2216 = vst [vmem:[%s251 + $0x70] sm:$0xff] %v2200
      %2217 = vst [vmem:[%s251 + $0x78] sm:$0xff] %v2201
      %v2218 = vmul.f32 %v2170, 1.442695
      %v2219 = vpow.pop %v2218
      %v2220 = vmul.f32 %v2171, 1.442695
      %v2221 = vpow.pop %v2220
      %v2222 = vmul.f32 %v2172, 1.442695
      %v2223 = vpow.pop %v2222
      %v2224 = vmul.f32 %v2173, 1.442695
      %v2225 = vpow.pop %v2224
      %v2226 = vmul.f32 %v2174, 1.442695
      %v2227 = vpow.pop %v2226
      %v2228 = vmul.f32 %v2175, 1.442695
      %v2229 = vpow.pop %v2228
      %v2230 = vmul.f32 %v2176, 1.442695
      %v2231 = vpow.pop %v2230
      %v2232 = vmul.f32 %v2177, 1.442695
      %v2233 = vpow.pop %v2232
      %v2234 = vmul.f32 %v2178, 1.442695
      %v2235 = vpow.pop %v2234
      %v2236 = vmul.f32 %v2179, 1.442695
      %v2237 = vpow.pop %v2236
      %v2238 = vmul.f32 %v2180, 1.442695
      %v2239 = vpow.pop %v2238
      %v2240 = vmul.f32 %v2181, 1.442695
      %v2241 = vpow.pop %v2240
      %v2242 = vmul.f32 %v2182, 1.442695
      %v2243 = vpow.pop %v2242
      %v2244 = vmul.f32 %v2183, 1.442695
      %v2245 = vpow.pop %v2244
      %v2246 = vmul.f32 %v2184, 1.442695
      %v2247 = vpow.pop %v2246
      %v2248 = vmul.f32 %v2185, 1.442695
      %v2249 = vpow.pop %v2248
      %vm2250 = vcmask 7168
      %2251 = vst.msk [vmem:[%s257] sm:$0xff] %vm2250, %v2219
      %2252 = vst.msk [vmem:[%s257 + $0x8] sm:$0xff] %vm2250, %v2221
      %2253 = vst.msk [vmem:[%s257 + $0x10] sm:$0xff] %vm2250, %v2223
      %2254 = vst.msk [vmem:[%s257 + $0x18] sm:$0xff] %vm2250, %v2225
      %2255 = vst.msk [vmem:[%s257 + $0x20] sm:$0xff] %vm2250, %v2227
      %2256 = vst.msk [vmem:[%s257 + $0x28] sm:$0xff] %vm2250, %v2229
      %2257 = vst.msk [vmem:[%s257 + $0x30] sm:$0xff] %vm2250, %v2231
      %2258 = vst.msk [vmem:[%s257 + $0x38] sm:$0xff] %vm2250, %v2233
      %2259 = vst.msk [vmem:[%s257 + $0x40] sm:$0xff] %vm2250, %v2235
      %2260 = vst.msk [vmem:[%s257 + $0x48] sm:$0xff] %vm2250, %v2237
      %2261 = vst.msk [vmem:[%s257 + $0x50] sm:$0xff] %vm2250, %v2239
      %2262 = vst.msk [vmem:[%s257 + $0x58] sm:$0xff] %vm2250, %v2241
      %2263 = vst.msk [vmem:[%s257 + $0x60] sm:$0xff] %vm2250, %v2243
      %2264 = vst.msk [vmem:[%s257 + $0x68] sm:$0xff] %vm2250, %v2245
      %2265 = vst.msk [vmem:[%s257 + $0x70] sm:$0xff] %vm2250, %v2247
      %2266 = vst.msk [vmem:[%s257 + $0x78] sm:$0xff] %vm2250, %v2249
      %s2267 = smul.u32 16, %s16
      %p2268 = scmp.lt.s32.totalorder %s2267, 47
      %s2269 = scalar_select %p2268, %s2267, 47
      %s2270 = smul.addr %s2269, 8
      %s2271 = scalar_lea.vmem %s3, %s2270
      %s2272 = smul.u32 16, %s16
      %p2273 = scmp.lt.s32.totalorder %s2272, 47
      %s2274 = scalar_select %p2273, %s2272, 47
      %s2275 = smul.addr %s2274, 8
      %s2276 = scalar_lea.vmem %s4, %s2275
      // Predicated region
      $region33: #{hier_softmax_forward.1} parent=31 // pred_check
        %p2277 = pneg %p112
      $region34: #{hier_softmax_forward.1} parent=31 // pred_check_branch
        %2279 = sbr.rel (%p2277) target = $region36
      $region35: #{hier_softmax_forward.1} parent=31 // pred_region
        %s2280 = smul.u32 16, %s16
      $region36: #{hier_softmax_forward.1} parent=31 // pred_fallthru
        _
      // Predicated region
      $region37: #{hier_softmax_forward.1} parent=31 // pred_check
        %p2281 = pneg %p138
      $region38: #{hier_softmax_forward.1} parent=31 // pred_check_branch
        %2283 = sbr.rel (%p2281) target = $region40
      $region39: #{hier_softmax_forward.1} parent=31 // pred_region
        %s2284 = smul.u32 16, %s16
      $region40: #{hier_softmax_forward.1} parent=31 // pred_fallthru
        _
    $region32: #{hier_softmax_forward.1} parent=5 // pred_fallthru
      _
    %p2285 = scmp.le.s32.totalorder 2, %s11
    // Predicated region
    $region41: #{hier_softmax_forward.1} parent=5 // pred_check
      %p2286 = pneg %p2285
    $region42: #{hier_softmax_forward.1} parent=5 // pred_check_branch
      %2288 = sbr.rel (%p2286) target = $region44
    $region43: #{hier_softmax_forward.1} parent=5 // pred_region
      %s2289 = ssub.s32 %s11, 2
      // Predicated region
      $region45: #{hier_softmax_forward.1} parent=43 // pred_check
        %p2290 = pneg %p118
      $region46: #{hier_softmax_forward.1} parent=43 // pred_check_branch
        %2292 = sbr.rel (%p2290) target = $region48
      $region47: #{hier_softmax_forward.1} parent=43 // pred_region
        %s2293 = smul.u32 16, %s17
        %p2294 = scmp.lt.s32.totalorder %s2293, 47
        %s2295 = scalar_select %p2294, %s2293, 47
        %s2296 = smul.addr %s2295, 8
        %s2297 = scalar_lea.vmem %s3, %s2296
      $region48: #{hier_softmax_forward.1} parent=43 // pred_fallthru
        _
      // Predicated region
      $region49: #{hier_softmax_forward.1} parent=43 // pred_check
        %p2298 = pneg %p144
      $region50: #{hier_softmax_forward.1} parent=43 // pred_check_branch
        %2300 = sbr.rel (%p2298) target = $region52
      $region51: #{hier_softmax_forward.1} parent=43 // pred_region
        %s2301 = smul.u32 16, %s17
        %p2302 = scmp.lt.s32.totalorder %s2301, 47
        %s2303 = scalar_select %p2302, %s2301, 47
        %s2304 = smul.addr %s2303, 8
        %s2305 = scalar_lea.vmem %s4, %s2304
      $region52: #{hier_softmax_forward.1} parent=43 // pred_fallthru
        _
    $region44: #{hier_softmax_forward.1} parent=5 // pred_fallthru
      _
  $region6: #{hier_softmax_forward.1} parent=0 // loop_footer
    %s15 = sadd.s32 1, %s11
  $region7: #{hier_softmax_forward.1} parent=0 // loop_footer_branch
    %10 = sbr.rel target = $region3
  $region8: #{hier_softmax_forward.1} parent=0 // loop_exit
    _

</llo_original>
